<compile_context>
chip_gen: v5e
topology: v5e:2x2
jax: 0.10.0
libtpu: 0.0.40
codegen_flags: <defaults>
</compile_context>

<pallas_src>
import functools

import jax
import jax.numpy as jnp
from jax import lax
from jax.experimental import pallas as pl
from jax.experimental.pallas import tpu as pltpu


def torch_conv_weight_to_hwio(w_oihw):
    """PyTorch Conv2d weights are (O, I, kH, kW); this kernel expects HWIO (kH, kW, I, O)."""
    return jnp.transpose(w_oihw, (2, 3, 1, 0))


def _fold_bn(gamma, beta, mean, var, conv_bias, eps):
    # inference BN: y = (z - mean)/sqrt(var+eps)*gamma + beta,  z = conv(x,w) + conv_bias
    #            => y = conv(x,w) * scale + (beta + (conv_bias - mean) * scale)
    scale = (gamma / jnp.sqrt(var + eps)).astype(jnp.float32)
    bias = (beta + (conv_bias - mean) * scale).astype(jnp.float32)
    return scale, bias


def _pick_strip_rows(ho, target):
    """Largest divisor of `ho` that is <= target (VMEM-budget knob; smaller on v7x)."""
    t = max(1, min(int(target), int(ho)))
    while t > 1 and ho % t != 0:
        t -= 1
    return t


def _double_conv_kernel(xs_ref, w1_ref, b1_ref, w2_ref, b2_ref, o_ref, h1pad_ref, *, stride):
    # xs_ref   : (1, R, W+2, Cin)    padded input row-strip (halo included), compute dtype
    # w1_ref   : (9*Cin, C1)         conv1 weights with BN1 scale folded in, compute dtype
    # b1_ref   : (1, C1)             folded BN1 bias (f32)
    # w2_ref   : (9*C1, C2p)         conv2 weights with BN2 scale folded in, compute dtype
    # b2_ref   : (1, C2p)            folded BN2 bias (f32, zero-padded channels)
    # o_ref    : (1, T, Wo, C2p)     output strip (lane-dense channel dim)
    # h1pad_ref: (T+2, Wo+2, C1)     VMEM scratch: W-padded intermediate incl. halo rows
    s = stride
    _, T, Wo, C2p = o_ref.shape
    C1 = w1_ref.shape[-1]
    t = pl.program_id(1)
    last_t = pl.num_programs(1) - 1

    x = xs_ref[0]                                   # (R, W+2, Cin), compute dtype
    Cin = x.shape[-1]

    # ---- conv1 (+ folded BN1 scale): ONE im2col matmul, K = 9*Cin ----
    cols = []
    for dh in range(3):
        for dw in range(3):
            blk = x[dh:dh + s * (T + 1) + 1, dw:dw + s * (Wo - 1) + 1, :]
            if s == 2:
                blk = blk[::2, ::2, :]              # stride-2: subsample taps up front
            cols.append(blk)                        # (T+2, Wo, Cin)
    patches1 = jnp.concatenate(cols, axis=-1).reshape((T + 2) * Wo, 9 * Cin)
    acc1 = jnp.dot(patches1, w1_ref[...], preferred_element_type=jnp.float32)
    h1 = jnp.maximum(acc1 + b1_ref[...], 0.0).reshape(T + 2, Wo, C1)   # halo rows included

    # ---- stage W-padded intermediate in VMEM scratch (interior fully overwritten;
    #      only the border is written with zeros) ----
    h1pad_ref[:, 1:Wo + 1, :] = h1
    zcol = jnp.zeros((T + 2, 1, C1), h1pad_ref.dtype)
    h1pad_ref[:, 0:1, :] = zcol
    h1pad_ref[:, Wo + 1:Wo + 2, :] = zcol

    zrow = jnp.zeros((1, Wo + 2, C1), h1pad_ref.dtype)

    @pl.when(t == 0)
    def _():  # conv2 top zero-padding at the global image edge
        h1pad_ref[0:1, :, :] = zrow

    @pl.when(t == last_t)
    def _():  # conv2 bottom zero-padding at the global image edge
        h1pad_ref[T + 1:T + 2, :, :] = zrow

    # ---- conv2 (+ folded BN2 scale): ONE im2col matmul, K = 9*C1 ----
    x2 = h1pad_ref[...].astype(w2_ref.dtype)        # (T+2, Wo+2, C1)
    cols2 = [x2[dh:dh + T, dw:dw + Wo, :] for dh in range(3) for dw in range(3)]
    patches2 = jnp.concatenate(cols2, axis=-1).reshape(T * Wo, 9 * C1)
    acc2 = jnp.dot(patches2, w2_ref[...], preferred_element_type=jnp.float32)
    h2 = jnp.maximum(acc2 + b2_ref[...], 0.0)
    o_ref[0] = h2.reshape(T, Wo, C2p).astype(o_ref.dtype)


def double_conv(x_nchw, params, *, stride=1, eps=1e-5,
                compute_dtype=jnp.bfloat16, strip_rows=8):
    """DoubleConv forward (inference-mode BN). Weights expected in HWIO (use
    torch_conv_weight_to_hwio for PyTorch OIHW weights)."""
    assert stride in (1, 2)
    x = jnp.transpose(x_nchw, (0, 2, 3, 1)).astype(jnp.float32)   # NCHW -> NHWC
    N, H, W, Cin = x.shape
    kh, kw, wcin, C1 = params["w1"].shape
    assert (kh, kw, wcin) == (3, 3, Cin)
    C2 = params["w2"].shape[-1]

    Ho = (H - 1) // stride + 1
    Wo = (W - 1) // stride + 1

    # --- fold BN scale into conv weights (wrapper side, free); keep f32 bias ---
    sc1, bi1 = _fold_bn(params["g1"], params["be1"], params["m1"], params["v1"],
                        params["b1"], eps)
    sc2, bi2 = _fold_bn(params["g2"], params["be2"], params["m2"], params["v2"],
                        params["b2"], eps)
    w1f = (params["w1"].astype(jnp.float32) * sc1).reshape(9 * Cin, C1)
    w2f = (params["w2"].astype(jnp.float32) * sc2).reshape(9 * C1, C2)

    # --- pad final output channels to a multiple of 128 => lane-dense output stores ---
    C2p = -(-C2 // 128) * 128
    if C2p != C2:
        w2f = jnp.pad(w2f, ((0, 0), (0, C2p - C2)))
        bi2 = jnp.pad(bi2, ((0, C2p - C2),))

    # --- row-strip tiling with recomputed halo (bounds VMEM; enables megacore parallel) ---
    T = _pick_strip_rows(Ho, strip_rows)            # strip height in OUTPUT rows
    S = Ho // T
    R = stride * T + stride + 3                     # padded input rows needed per strip
    top = stride + 1                                # conv pad (1) + halo recompute rows
    bottom = stride * Ho + 2 - H
    xbig = jnp.pad(x, ((0, 0), (top, bottom), (1, 1), (0, 0)))
    x_strips = jnp.stack(
        [xbig[:, t * stride * T: t * stride * T + R] for t in range(S)], axis=1
    ).reshape(N * S, R, W + 2, Cin).astype(compute_dtype)

    w1c = w1f.astype(compute_dtype)
    w2c = w2f.astype(compute_dtype)
    b1 = bi1.reshape(1, C1)
    b2 = bi2.reshape(1, C2p)

    out = pl.pallas_call(
        functools.partial(_double_conv_kernel, stride=stride),
        out_shape=jax.ShapeDtypeStruct((N, Ho, Wo, C2p), jnp.float32),
        grid_spec=pltpu.PrefetchScalarGridSpec(
            num_scalar_prefetch=0,
            grid=(N, S),
            in_specs=[
                pl.BlockSpec((1, R, W + 2, Cin), lambda n, t: (n * S + t, 0, 0, 0)),
                pl.BlockSpec((9 * Cin, C1), lambda n, t: (0, 0)),
                pl.BlockSpec((1, C1), lambda n, t: (0, 0)),
                pl.BlockSpec((9 * C1, C2p), lambda n, t: (0, 0)),
                pl.BlockSpec((1, C2p), lambda n, t: (0, 0)),
            ],
            out_specs=pl.BlockSpec((1, T, Wo, C2p), lambda n, t: (n, t, 0, 0)),
            scratch_shapes=[pltpu.VMEM((T + 2, Wo + 2, C1), jnp.float32)],
        ),
        compiler_params=pltpu.CompilerParams(
            dimension_semantics=("parallel", "parallel"),   # batch & strips independent
            vmem_limit_bytes=32 * 1024 * 1024,              # safe on v5e/v6e/v7x
        ),
    )(x_strips, w1c, b1, w2c, b2)

    out = out[..., :C2]                                     # drop lane padding
    return jnp.transpose(out, (0, 3, 1, 2))                 # NHWC -> NCHW


# ----------------------------- references (pure JAX / XLA) -----------------------------

def _reference_double_conv(x_nchw, params, *, stride=1, eps=1e-5):
    """Exact PyTorch DoubleConv semantics (inference-mode BN), f32, via XLA convs."""
    x = jnp.transpose(x_nchw, (0, 2, 3, 1)).astype(jnp.float32)
    dn = ("NHWC", "HWIO", "NHWC")

    def conv_bn_relu(x, w, b, g, be, m, v, s):
        y = lax.conv_general_dilated(x, w, (s, s), [(1, 1), (1, 1)],
                                     dimension_numbers=dn) + b
        y = (y - m) / jnp.sqrt(v + eps) * g + be
        return jnp.maximum(y, 0.0)

    y = conv_bn_relu(x, params["w1"], params["b1"], params["g1"], params["be1"],
                     params["m1"], params["v1"], stride)
    y = conv_bn_relu(y, params["w2"], params["b2"], params["g2"], params["be2"],
                     params["m2"], params["v2"], 1)
    return jnp.transpose(y, (0, 3, 1, 2))


def _reference_double_conv_quantized(x_nchw, params, *, stride=1, eps=1e-5,
                                     compute_dtype=jnp.bfloat16):
    """Mimics the kernel numerics: BN scale folded into weights, weights/activations rounded
    to compute_dtype before each conv, f32 accumulation + f32 bias + ReLU."""
    x = jnp.transpose(x_nchw, (0, 2, 3, 1)).astype(jnp.float32)
    dn = ("NHWC", "HWIO", "NHWC")
    sc1, bi1 = _fold_bn(params["g1"], params["be1"], params["m1"], params["v1"],
                        params["b1"], eps)
    sc2, bi2 = _fold_bn(params["g2"], params["be2"], params["m2"], params["v2"],
                        params["b2"], eps)
    w1f = params["w1"].astype(jnp.float32) * sc1
    w2f = params["w2"].astype(jnp.float32) * sc2

    def q(a):
        return a.astype(compute_dtype).astype(jnp.float32)

    y = lax.conv_general_dilated(q(x), q(w1f), (stride, stride), [(1, 1), (1, 1)],
                                 dimension_numbers=dn)
    y = jnp.maximum(y + bi1, 0.0)
    y = lax.conv_general_dilated(q(y), q(w2f), (1, 1), [(1, 1), (1, 1)],
                                 dimension_numbers=dn)
    y = jnp.maximum(y + bi2, 0.0)
    return jnp.transpose(y, (0, 3, 1, 2))


def make_params(key, in_channels, out_channels):
    ks = jax.random.split(key, 12)
    return {
        "w1": jax.random.normal(ks[0], (3, 3, in_channels, out_channels), jnp.float32) * 0.1,
        "b1": jax.random.normal(ks[1], (out_channels,), jnp.float32) * 0.05,
        "g1": 1.0 + 0.1 * jax.random.normal(ks[2], (out_channels,), jnp.float32),
        "be1": 0.05 * jax.random.normal(ks[3], (out_channels,), jnp.float32),
        "m1": 0.05 * jax.random.normal(ks[4], (out_channels,), jnp.float32),
        "v1": 0.5 + jax.random.uniform(ks[5], (out_channels,), jnp.float32),
        "w2": jax.random.normal(ks[6], (3, 3, out_channels, out_channels), jnp.float32) * 0.1,
        "b2": jax.random.normal(ks[7], (out_channels,), jnp.float32) * 0.05,
        "g2": 1.0 + 0.1 * jax.random.normal(ks[8], (out_channels,), jnp.float32),
        "be2": 0.05 * jax.random.normal(ks[9], (out_channels,), jnp.float32),
        "m2": 0.05 * jax.random.normal(ks[10], (out_channels,), jnp.float32),
        "v2": 0.5 + jax.random.uniform(ks[11], (out_channels,), jnp.float32),
    }


if __name__ == "__main__":
    key = jax.random.PRNGKey(0)
    k_x, k_p = jax.random.split(key)

    N, Cin, H, W = 2, 4, 16, 16
    Cout = 8

    x = jax.random.normal(k_x, (N, Cin, H, W), jnp.float32)   # PyTorch-style NCHW input
    params = make_params(k_p, Cin, Cout)

    # 1) stride=1, f32 compute path vs. exact PyTorch (inference-BN) semantics.
    out = jax.block_until_ready(double_conv(x, params, stride=1, compute_dtype=jnp.float32))
    ref = jax.block_until_ready(_reference_double_conv(x, params, stride=1))
    assert out.shape == (N, Cout, H, W), out.shape
    assert jnp.allclose(out, ref, rtol=1e-3, atol=1e-3), float(jnp.max(jnp.abs(out - ref)))

    # 2) stride=2, f32 compute path (downsampling DoubleConv).
    out2 = jax.block_until_ready(double_conv(x, params, stride=2, compute_dtype=jnp.float32))
    ref2 = jax.block_until_ready(_reference_double_conv(x, params, stride=2))
    assert out2.shape == (N, Cout, H // 2, W // 2), out2.shape
    assert jnp.allclose(out2, ref2, rtol=1e-3, atol=1e-3), float(jnp.max(jnp.abs(out2 - ref2)))

    # 3) stride=1, bf16 MXU path (f32 accumulation) vs. a reference with matching rounding.
    out3 = jax.block_until_ready(double_conv(x, params, stride=1, compute_dtype=jnp.bfloat16))
    ref3 = jax.block_until_ready(
        _reference_double_conv_quantized(x, params, stride=1, compute_dtype=jnp.bfloat16))
    assert jnp.allclose(out3, ref3, rtol=2e-3, atol=2e-3), float(jnp.max(jnp.abs(out3 - ref3)))

    print("KERNEL_OK")
</pallas_src>

<mosaic_0001>
module attributes {stable_mosaic.version = 11 : i64} {
  func.func @_double_conv_kernel(%arg0: i32, %arg1: i32, %arg2: memref<1x12x18x4xf32, #tpu.memory_space<vmem>>, %arg3: memref<36x8xf32, #tpu.memory_space<vmem>>, %arg4: memref<1x8xf32, #tpu.memory_space<vmem>>, %arg5: memref<72x128xf32, #tpu.memory_space<vmem>>, %arg6: memref<1x128xf32, #tpu.memory_space<vmem>>, %arg7: memref<1x8x16x128xf32, #tpu.memory_space<vmem>>, %arg8: memref<10x18x8xf32, #tpu.memory_space<vmem>>) attributes {dimension_semantics = [#tpu.dimension_semantics<parallel>, #tpu.dimension_semantics<parallel>], iteration_bounds = array<i64: 2, 2>, scalar_prefetch = 0 : i64, scratch_operands = 1 : i64, tpu.core_type = #tpu.core_type<tc>, window_params = [{transform_indices = @transform_0, window_bounds = array<i64: 1, 12, 18, 4>}, {pipeline_mode = #tpu.pipeline_mode<synchronous>, transform_indices = @transform_1, window_bounds = array<i64: 36, 8>}, {pipeline_mode = #tpu.pipeline_mode<synchronous>, transform_indices = @transform_2, window_bounds = array<i64: 1, 8>}, {pipeline_mode = #tpu.pipeline_mode<synchronous>, transform_indices = @transform_3, window_bounds = array<i64: 72, 128>}, {pipeline_mode = #tpu.pipeline_mode<synchronous>, transform_indices = @transform_4, window_bounds = array<i64: 1, 128>}, {transform_indices = @transform_5, window_bounds = array<i64: 1, 8, 16, 128>}]} {
    %c0 = arith.constant 0 : index
    %c0_0 = arith.constant 0 : index
    %c0_1 = arith.constant 0 : index
    %c0_2 = arith.constant 0 : index
    %0 = vector.load %arg2[%c0, %c0_0, %c0_1, %c0_2] : memref<1x12x18x4xf32, #tpu.memory_space<vmem>>, vector<1x12x18x4xf32>
    %1 = vector.shape_cast %0 : vector<1x12x18x4xf32> to vector<12x18x4xf32>
    %2 = vector.extract_strided_slice %1 {offsets = [0, 0, 0], sizes = [10, 16, 4], strides = [1, 1, 1]} : vector<12x18x4xf32> to vector<10x16x4xf32>
    %3 = vector.extract_strided_slice %1 {offsets = [0, 1, 0], sizes = [10, 16, 4], strides = [1, 1, 1]} : vector<12x18x4xf32> to vector<10x16x4xf32>
    %4 = vector.extract_strided_slice %1 {offsets = [0, 2, 0], sizes = [10, 16, 4], strides = [1, 1, 1]} : vector<12x18x4xf32> to vector<10x16x4xf32>
    %5 = vector.extract_strided_slice %1 {offsets = [1, 0, 0], sizes = [10, 16, 4], strides = [1, 1, 1]} : vector<12x18x4xf32> to vector<10x16x4xf32>
    %6 = vector.extract_strided_slice %1 {offsets = [1, 1, 0], sizes = [10, 16, 4], strides = [1, 1, 1]} : vector<12x18x4xf32> to vector<10x16x4xf32>
    %7 = vector.extract_strided_slice %1 {offsets = [1, 2, 0], sizes = [10, 16, 4], strides = [1, 1, 1]} : vector<12x18x4xf32> to vector<10x16x4xf32>
    %8 = vector.extract_strided_slice %1 {offsets = [2, 0, 0], sizes = [10, 16, 4], strides = [1, 1, 1]} : vector<12x18x4xf32> to vector<10x16x4xf32>
    %9 = vector.extract_strided_slice %1 {offsets = [2, 1, 0], sizes = [10, 16, 4], strides = [1, 1, 1]} : vector<12x18x4xf32> to vector<10x16x4xf32>
    %10 = vector.extract_strided_slice %1 {offsets = [2, 2, 0], sizes = [10, 16, 4], strides = [1, 1, 1]} : vector<12x18x4xf32> to vector<10x16x4xf32>
    %11 = tpu.concatenate %2, %3, %4, %5, %6, %7, %8, %9, %10 in 2 : vector<10x16x4xf32>, vector<10x16x4xf32>, vector<10x16x4xf32>, vector<10x16x4xf32>, vector<10x16x4xf32>, vector<10x16x4xf32>, vector<10x16x4xf32>, vector<10x16x4xf32>, vector<10x16x4xf32> -> vector<10x16x36xf32>
    %12 = vector.shape_cast %11 : vector<10x16x36xf32> to vector<160x36xf32>
    %c0_3 = arith.constant 0 : index
    %c0_4 = arith.constant 0 : index
    %13 = vector.load %arg3[%c0_3, %c0_4] : memref<36x8xf32, #tpu.memory_space<vmem>>, vector<36x8xf32>
    %cst = arith.constant dense<0.000000e+00> : vector<160x8xf32>
    %14 = tpu.matmul %12, %13, %cst {dimension_numbers = #tpu.dot_dimension_numbers<[1], [0], [0], [1], [0, 0, 1, 1], [], []>} : vector<160x36xf32>, vector<36x8xf32>, vector<160x8xf32> -> vector<160x8xf32>
    %c0_5 = arith.constant 0 : index
    %c0_6 = arith.constant 0 : index
    %15 = vector.load %arg4[%c0_5, %c0_6] : memref<1x8xf32, #tpu.memory_space<vmem>>, vector<1x8xf32>
    %16 = vector.broadcast %15 : vector<1x8xf32> to vector<160x8xf32>
    %17 = arith.addf %14, %16 : vector<160x8xf32>
    %cst_7 = arith.constant 0.000000e+00 : f32
    %18 = vector.broadcast %cst_7 : f32 to vector<160x8xf32>
    %19 = arith.maximumf %17, %18 : vector<160x8xf32>
    %20 = vector.shape_cast %19 : vector<160x8xf32> to vector<10x16x8xf32>
    %c0_8 = arith.constant 0 : index
    %c1 = arith.constant 1 : index
    %c0_9 = arith.constant 0 : index
    %21 = vector.load %arg8[%c0_8, %c1, %c0_9] : memref<10x18x8xf32, #tpu.memory_space<vmem>>, vector<10x16x8xf32>
    tpu.vector_store %arg8[%c0_8, %c1, %c0_9], %20 {strides = array<i32>} : memref<10x18x8xf32, #tpu.memory_space<vmem>>, vector<10x16x8xf32>,
    %cst_10 = arith.constant 0.000000e+00 : f32
    %22 = vector.broadcast %cst_10 : f32 to vector<10x1x8xf32>
    %c0_11 = arith.constant 0 : index
    %c0_12 = arith.constant 0 : index
    %c0_13 = arith.constant 0 : index
    %23 = vector.load %arg8[%c0_11, %c0_12, %c0_13] : memref<10x18x8xf32, #tpu.memory_space<vmem>>, vector<10x1x8xf32>
    tpu.vector_store %arg8[%c0_11, %c0_12, %c0_13], %22 {strides = array<i32>} : memref<10x18x8xf32, #tpu.memory_space<vmem>>, vector<10x1x8xf32>,
    %c0_14 = arith.constant 0 : index
    %c17 = arith.constant 17 : index
    %c0_15 = arith.constant 0 : index
    %24 = vector.load %arg8[%c0_14, %c17, %c0_15] : memref<10x18x8xf32, #tpu.memory_space<vmem>>, vector<10x1x8xf32>
    tpu.vector_store %arg8[%c0_14, %c17, %c0_15], %22 {strides = array<i32>} : memref<10x18x8xf32, #tpu.memory_space<vmem>>, vector<10x1x8xf32>,
    %cst_16 = arith.constant 0.000000e+00 : f32
    %25 = vector.broadcast %cst_16 : f32 to vector<1x18x8xf32>
    %c0_i32 = arith.constant 0 : i32
    %26 = arith.cmpi eq, %arg1, %c0_i32 : i32
    %27 = arith.extui %26 : i1 to i32
    %c0_i32_17 = arith.constant 0 : i32
    %28 = arith.cmpi ne, %27, %c0_i32_17 : i32
    scf.if %28 {
      %c0_32 = arith.constant 0 : index
      %c0_33 = arith.constant 0 : index
      %c0_34 = arith.constant 0 : index
      %55 = vector.load %arg8[%c0_32, %c0_33, %c0_34] : memref<10x18x8xf32, #tpu.memory_space<vmem>>, vector<1x18x8xf32>
      tpu.vector_store %arg8[%c0_32, %c0_33, %c0_34], %25 {strides = array<i32>} : memref<10x18x8xf32, #tpu.memory_space<vmem>>, vector<1x18x8xf32>,
    } else {
    }
    %c1_i32 = arith.constant 1 : i32
    %29 = arith.cmpi eq, %arg1, %c1_i32 : i32
    %30 = arith.extui %29 : i1 to i32
    %c0_i32_18 = arith.constant 0 : i32
    %31 = arith.cmpi ne, %30, %c0_i32_18 : i32
    scf.if %31 {
      %c9 = arith.constant 9 : index
      %c0_32 = arith.constant 0 : index
      %c0_33 = arith.constant 0 : index
      %55 = vector.load %arg8[%c9, %c0_32, %c0_33] : memref<10x18x8xf32, #tpu.memory_space<vmem>>, vector<1x18x8xf32>
      tpu.vector_store %arg8[%c9, %c0_32, %c0_33], %25 {strides = array<i32>} : memref<10x18x8xf32, #tpu.memory_space<vmem>>, vector<1x18x8xf32>,
    } else {
    }
    %c0_19 = arith.constant 0 : index
    %c0_20 = arith.constant 0 : index
    %c0_21 = arith.constant 0 : index
    %32 = vector.load %arg8[%c0_19, %c0_20, %c0_21] : memref<10x18x8xf32, #tpu.memory_space<vmem>>, vector<10x18x8xf32>
    %33 = vector.extract_strided_slice %32 {offsets = [0, 0, 0], sizes = [8, 16, 8], strides = [1, 1, 1]} : vector<10x18x8xf32> to vector<8x16x8xf32>
    %34 = vector.extract_strided_slice %32 {offsets = [0, 1, 0], sizes = [8, 16, 8], strides = [1, 1, 1]} : vector<10x18x8xf32> to vector<8x16x8xf32>
    %35 = vector.extract_strided_slice %32 {offsets = [0, 2, 0], sizes = [8, 16, 8], strides = [1, 1, 1]} : vector<10x18x8xf32> to vector<8x16x8xf32>
    %36 = vector.extract_strided_slice %32 {offsets = [1, 0, 0], sizes = [8, 16, 8], strides = [1, 1, 1]} : vector<10x18x8xf32> to vector<8x16x8xf32>
    %37 = vector.extract_strided_slice %32 {offsets = [1, 1, 0], sizes = [8, 16, 8], strides = [1, 1, 1]} : vector<10x18x8xf32> to vector<8x16x8xf32>
    %38 = vector.extract_strided_slice %32 {offsets = [1, 2, 0], sizes = [8, 16, 8], strides = [1, 1, 1]} : vector<10x18x8xf32> to vector<8x16x8xf32>
    %39 = vector.extract_strided_slice %32 {offsets = [2, 0, 0], sizes = [8, 16, 8], strides = [1, 1, 1]} : vector<10x18x8xf32> to vector<8x16x8xf32>
    %40 = vector.extract_strided_slice %32 {offsets = [2, 1, 0], sizes = [8, 16, 8], strides = [1, 1, 1]} : vector<10x18x8xf32> to vector<8x16x8xf32>
    %41 = vector.extract_strided_slice %32 {offsets = [2, 2, 0], sizes = [8, 16, 8], strides = [1, 1, 1]} : vector<10x18x8xf32> to vector<8x16x8xf32>
    %42 = tpu.concatenate %33, %34, %35, %36, %37, %38, %39, %40, %41 in 2 : vector<8x16x8xf32>, vector<8x16x8xf32>, vector<8x16x8xf32>, vector<8x16x8xf32>, vector<8x16x8xf32>, vector<8x16x8xf32>, vector<8x16x8xf32>, vector<8x16x8xf32>, vector<8x16x8xf32> -> vector<8x16x72xf32>
    %43 = vector.shape_cast %42 : vector<8x16x72xf32> to vector<128x72xf32>
    %c0_22 = arith.constant 0 : index
    %c0_23 = arith.constant 0 : index
    %44 = vector.load %arg5[%c0_22, %c0_23] : memref<72x128xf32, #tpu.memory_space<vmem>>, vector<72x128xf32>
    %cst_24 = arith.constant dense<0.000000e+00> : vector<128x128xf32>
    %45 = tpu.matmul %43, %44, %cst_24 {dimension_numbers = #tpu.dot_dimension_numbers<[1], [0], [0], [1], [0, 0, 1, 1], [], []>} : vector<128x72xf32>, vector<72x128xf32>, vector<128x128xf32> -> vector<128x128xf32>
    %c0_25 = arith.constant 0 : index
    %c0_26 = arith.constant 0 : index
    %46 = vector.load %arg6[%c0_25, %c0_26] : memref<1x128xf32, #tpu.memory_space<vmem>>, vector<1x128xf32>
    %47 = vector.broadcast %46 : vector<1x128xf32> to vector<128x128xf32>
    %48 = arith.addf %45, %47 : vector<128x128xf32>
    %cst_27 = arith.constant 0.000000e+00 : f32
    %49 = vector.broadcast %cst_27 : f32 to vector<128x128xf32>
    %50 = arith.maximumf %48, %49 : vector<128x128xf32>
    %51 = vector.shape_cast %50 : vector<128x128xf32> to vector<8x16x128xf32>
    %c0_28 = arith.constant 0 : index
    %c0_29 = arith.constant 0 : index
    %c0_30 = arith.constant 0 : index
    %c0_31 = arith.constant 0 : index
    %52 = vector.load %arg7[%c0_28, %c0_29, %c0_30, %c0_31] : memref<1x8x16x128xf32, #tpu.memory_space<vmem>>, vector<1x8x16x128xf32>
    %53 = vector.shape_cast %52 : vector<1x8x16x128xf32> to vector<8x16x128xf32>
    %54 = vector.shape_cast %51 : vector<8x16x128xf32> to vector<1x8x16x128xf32>
    tpu.vector_store %arg7[%c0_28, %c0_29, %c0_30, %c0_31], %54 {strides = array<i32>} : memref<1x8x16x128xf32, #tpu.memory_space<vmem>>, vector<1x8x16x128xf32>,
    return
  }
  func.func @transform_0(%arg0: i32, %arg1: i32) -> (i32, i32, i32, i32) {
    %c2_i32 = arith.constant 2 : i32
    %0 = arith.muli %arg0, %c2_i32 : i32
    %1 = arith.addi %0, %arg1 : i32
    %c0_i32 = arith.constant 0 : i32
    %c0_i32_0 = arith.constant 0 : i32
    %c0_i32_1 = arith.constant 0 : i32
    %c0_i32_2 = arith.constant 0 : i32
    return %1, %c0_i32, %c0_i32_0, %c0_i32_1 : i32, i32, i32, i32
  }
  func.func @transform_1(%arg0: i32, %arg1: i32) -> (i32, i32) {
    %c0_i32 = arith.constant 0 : i32
    %c0_i32_0 = arith.constant 0 : i32
    %c0_i32_1 = arith.constant 0 : i32
    return %c0_i32, %c0_i32_0 : i32, i32
  }
  func.func @transform_2(%arg0: i32, %arg1: i32) -> (i32, i32) {
    %c0_i32 = arith.constant 0 : i32
    %c0_i32_0 = arith.constant 0 : i32
    %c0_i32_1 = arith.constant 0 : i32
    return %c0_i32, %c0_i32_0 : i32, i32
  }
  func.func @transform_3(%arg0: i32, %arg1: i32) -> (i32, i32) {
    %c0_i32 = arith.constant 0 : i32
    %c0_i32_0 = arith.constant 0 : i32
    %c0_i32_1 = arith.constant 0 : i32
    return %c0_i32, %c0_i32_0 : i32, i32
  }
  func.func @transform_4(%arg0: i32, %arg1: i32) -> (i32, i32) {
    %c0_i32 = arith.constant 0 : i32
    %c0_i32_0 = arith.constant 0 : i32
    %c0_i32_1 = arith.constant 0 : i32
    return %c0_i32, %c0_i32_0 : i32, i32
  }
  func.func @transform_5(%arg0: i32, %arg1: i32) -> (i32, i32, i32, i32) {
    %c0_i32 = arith.constant 0 : i32
    %c0_i32_0 = arith.constant 0 : i32
    %c0_i32_1 = arith.constant 0 : i32
    return %arg0, %arg1, %c0_i32, %c0_i32_0 : i32, i32, i32, i32
  }
}

</mosaic_0001>

<llo_original>
// kernel: tpu_custom_call.1
$region0: #{tpu_custom_call.1}
  #allocation0 [shape = 'u32[]', space=smem, size = 0x4, offset = 0x4, fixed_abs, tag = 'smem constant byte address 0x4 - core index']
  #allocation1 [shape = 'u32[72,128]{1,0:T(1,128)}', space=vmem, size = 0x9000, scoped, tag = 'internal scratch']
  #allocation2 [shape = 'f32[10,18,8]{2,1,0:T(8,128)}', space=vmem, size = 0x1e000, scoped, tag = 'scratch operand']
  %s0 = inlined_call_operand.vmem [shape: f32[4,12,18,4], index: 0, kind: input, shape index: {}]
  %s1 = inlined_call_operand.vmem [shape: f32[36,8], index: 1, kind: input, shape index: {}]
  %s2 = inlined_call_operand.vmem [shape: f32[1,8], index: 2, kind: input, shape index: {}]
  %s3 = inlined_call_operand.vmem [shape: f32[72,128], index: 3, kind: input, shape index: {}]
  %s4 = inlined_call_operand.vmem [shape: f32[1,128], index: 4, kind: input, shape index: {}]
  %s5 = inlined_call_operand.hbm [shape: f32[2,16,16,128], index: 5, kind: output, shape index: {}]
  %s6 = sld [smem:[#allocation0]]
  $region61: #{tpu_custom_call.1} parent=0
    _
  %s8 = ssub.s32 1, %s6
  %s9 = scalar_select 0, %s8, %s6
  $region1: #{tpu_custom_call.1} parent=0
    #allocation3 [shape = 'u8[131072]{0}', space=vmem, size = 0x20000, scoped, tag = 'output window, operand 0']
    #allocation4 [shape = 's32[2]{0}', space=sflag, size = 0x8, scoped, tag = 'scoped memory for tpu_custom_call.1']
    %10 = vsyncpa [#allocation4], 0
    %s11 = scalar_lea.sflag [#allocation4], 1
    %12 = vsyncpa %s11, 0
    loop: start=0, step=1, limit=6
    $region2: #{tpu_custom_call.1} parent=1 // loop_pre_header
      _
    $region3: #{tpu_custom_call.1} parent=1 // loop_header
      %s14 = sphi 0, %s18
      %p15 = scmp.ge.s32.totalorder %s14, 6
      %s21 = sphi 0, %s33
      %s22 = sphi 0, %s29
      %s23 = sphi 0, %s21
      %s24 = sphi 0, %s22
      %s25 = sphi 0, %s23
      %s26 = sphi 0, %s24
      %s40 = sphi 0, %s42
      %s43 = sphi 0, %s40
      %s44 = sphi 0, %s43
      %s60 = sphi 0, %s44
      %s64 = sphi 0, %s64
      %s66 = sphi 0, %s64
      %s67 = sphi 0, %s66
      %s81 = sphi 0, %s67
      %s85 = sphi 0, %s85
      %s87 = sphi 0, %s85
      %s88 = sphi 0, %s87
      %s102 = sphi 0, %s88
      %s106 = sphi 0, %s106
      %s108 = sphi 0, %s106
      %s109 = sphi 0, %s108
      %s123 = sphi 0, %s109
      %s127 = sphi 0, %s127
      %s129 = sphi 0, %s127
      %s130 = sphi 0, %s129
      %s144 = sphi 0, %s130
      %s152 = sphi 0, %s154
      %s155 = sphi 0, %s152
      %s156 = sphi 0, %s155
      %s172 = sphi 0, %s156
    $region4: #{tpu_custom_call.1} parent=1 // loop_header_branch
      %17 = sbr.rel (%p15) target = $region8
    $region5: #{tpu_custom_call.1} parent=1 // loop_body
      %s19 = ssub.s32 %s14, 1
      %s20 = ssub.s32 %s14, 2
      %s27 = sadd.s32 1, %s22
      %p28 = scmp.ge.s32.totalorder %s27, 2
      %s29 = scalar_select %p28, 0, %s27
      %s30 = sadd.s32 1, %s21
      %s31 = scalar_select %p28, %s30, %s21
      %p32 = scmp.ge.s32.totalorder %s31, 2
      %s33 = scalar_select %p32, 0, %s31
      %s34 = smul.u32 %s21, 2
      %s35 = sadd.s32 %s34, %s22
      %s36 = smul.u32 %s33, 2
      %s37 = sadd.s32 %s36, %s29
      %s38 = ssub.s32 %s35, %s37
      %p39 = scmp.eq.s32.totalorder %s38, 0
      %s41 = sadd.s32 %s40, 1
      %s42 = scalar_select %p39, %s40, %s41
      %p45 = pneg %p39
      %p46 = scmp.eq.s32.totalorder %s14, 3
      %p47 = por %p45, %p46
      %p48 = scmp.ne.s32.totalorder %s40, %s43
      %p49 = scmp.eq.s32.totalorder %s14, 0
      %p50 = por %p48, %p49
      %p51 = scmp.ne.s32.totalorder %s40, %s43
      %p52 = scmp.eq.s32.totalorder %s19, 3
      %p53 = por %p51, %p52
      %p54 = scmp.ne.s32.totalorder %s43, %s44
      %p55 = scmp.eq.s32.totalorder %s19, 0
      %p56 = por %p54, %p55
      %p57 = scmp.ne.s32.totalorder %s43, %s44
      %p58 = scmp.eq.s32.totalorder %s20, 3
      %p59 = por %p57, %p58
      %p61 = scmp.ne.s32.totalorder %s44, %s60
      %p62 = scmp.eq.s32.totalorder %s20, 0
      %p63 = por %p61, %p62
      %s65 = sadd.s32 %s64, 1
      %p68 = scmp.eq.s32.totalorder %s14, 3
      %p69 = scmp.ne.s32.totalorder %s64, %s66
      %p70 = scmp.eq.s32.totalorder %s14, 0
      %p71 = por %p69, %p70
      %p72 = scmp.ne.s32.totalorder %s64, %s66
      %p73 = scmp.eq.s32.totalorder %s19, 3
      %p74 = por %p72, %p73
      %p75 = scmp.ne.s32.totalorder %s66, %s67
      %p76 = scmp.eq.s32.totalorder %s19, 0
      %p77 = por %p75, %p76
      %p78 = scmp.ne.s32.totalorder %s66, %s67
      %p79 = scmp.eq.s32.totalorder %s20, 3
      %p80 = por %p78, %p79
      %p82 = scmp.ne.s32.totalorder %s67, %s81
      %p83 = scmp.eq.s32.totalorder %s20, 0
      %p84 = por %p82, %p83
      %s86 = sadd.s32 %s85, 1
      %p89 = scmp.eq.s32.totalorder %s14, 3
      %p90 = scmp.ne.s32.totalorder %s85, %s87
      %p91 = scmp.eq.s32.totalorder %s14, 0
      %p92 = por %p90, %p91
      %p93 = scmp.ne.s32.totalorder %s85, %s87
      %p94 = scmp.eq.s32.totalorder %s19, 3
      %p95 = por %p93, %p94
      %p96 = scmp.ne.s32.totalorder %s87, %s88
      %p97 = scmp.eq.s32.totalorder %s19, 0
      %p98 = por %p96, %p97
      %p99 = scmp.ne.s32.totalorder %s87, %s88
      %p100 = scmp.eq.s32.totalorder %s20, 3
      %p101 = por %p99, %p100
      %p103 = scmp.ne.s32.totalorder %s88, %s102
      %p104 = scmp.eq.s32.totalorder %s20, 0
      %p105 = por %p103, %p104
      %s107 = sadd.s32 %s106, 1
      %p110 = scmp.eq.s32.totalorder %s14, 3
      %p111 = scmp.ne.s32.totalorder %s106, %s108
      %p112 = scmp.eq.s32.totalorder %s14, 0
      %p113 = por %p111, %p112
      %p114 = scmp.ne.s32.totalorder %s106, %s108
      %p115 = scmp.eq.s32.totalorder %s19, 3
      %p116 = por %p114, %p115
      %p117 = scmp.ne.s32.totalorder %s108, %s109
      %p118 = scmp.eq.s32.totalorder %s19, 0
      %p119 = por %p117, %p118
      %p120 = scmp.ne.s32.totalorder %s108, %s109
      %p121 = scmp.eq.s32.totalorder %s20, 3
      %p122 = por %p120, %p121
      %p124 = scmp.ne.s32.totalorder %s109, %s123
      %p125 = scmp.eq.s32.totalorder %s20, 0
      %p126 = por %p124, %p125
      %s128 = sadd.s32 %s127, 1
      %p131 = scmp.eq.s32.totalorder %s14, 3
      %p132 = scmp.ne.s32.totalorder %s127, %s129
      %p133 = scmp.eq.s32.totalorder %s14, 0
      %p134 = por %p132, %p133
      %p135 = scmp.ne.s32.totalorder %s127, %s129
      %p136 = scmp.eq.s32.totalorder %s19, 3
      %p137 = por %p135, %p136
      %p138 = scmp.ne.s32.totalorder %s129, %s130
      %p139 = scmp.eq.s32.totalorder %s19, 0
      %p140 = por %p138, %p139
      %p141 = scmp.ne.s32.totalorder %s129, %s130
      %p142 = scmp.eq.s32.totalorder %s20, 3
      %p143 = por %p141, %p142
      %p145 = scmp.ne.s32.totalorder %s130, %s144
      %p146 = scmp.eq.s32.totalorder %s20, 0
      %p147 = por %p145, %p146
      %s148 = ssub.s32 %s21, %s33
      %s149 = ssub.s32 %s22, %s29
      %s150 = sor.u32 %s148, %s149
      %p151 = scmp.eq.s32.totalorder %s150, 0
      %s153 = sadd.s32 %s152, 1
      %s154 = scalar_select %p151, %s152, %s153
      %p157 = pneg %p151
      %p158 = scmp.eq.s32.totalorder %s14, 3
      %p159 = por %p157, %p158
      %p160 = scmp.ne.s32.totalorder %s152, %s155
      %p161 = scmp.eq.s32.totalorder %s14, 0
      %p162 = por %p160, %p161
      %p163 = scmp.ne.s32.totalorder %s152, %s155
      %p164 = scmp.eq.s32.totalorder %s19, 3
      %p165 = por %p163, %p164
      %p166 = scmp.ne.s32.totalorder %s155, %s156
      %p167 = scmp.eq.s32.totalorder %s19, 0
      %p168 = por %p166, %p167
      %p169 = scmp.ne.s32.totalorder %s155, %s156
      %p170 = scmp.eq.s32.totalorder %s20, 3
      %p171 = por %p169, %p170
      %p173 = scmp.ne.s32.totalorder %s156, %s172
      %p174 = scmp.eq.s32.totalorder %s20, 0
      %p175 = por %p173, %p174
      %p176 = scmp.le.s32.totalorder 1, %s14
      %p177 = scmp.lt.s32.totalorder %s14, 5
      %p178 = pnand %p176, %p177
      %p179 = pneg %p178
      // Predicated region
      $region9: #{tpu_custom_call.1} parent=5 // pred_check
        _
      $region10: #{tpu_custom_call.1} parent=5 // pred_check_branch
        %181 = sbr.rel (%p178) target = $region12
      $region11: #{tpu_custom_call.1} parent=5 // pred_region
        %s182 = ssub.s32 %s14, 1
        // Predicated region
        $region13: #{tpu_custom_call.1} parent=11 // pred_check
          %p183 = pneg %p77
        $region14: #{tpu_custom_call.1} parent=11 // pred_check_branch
          %185 = sbr.rel (%p183) target = $region16
        $region15: #{tpu_custom_call.1} parent=11 // pred_region
          _
        $region16: #{tpu_custom_call.1} parent=11 // pred_fallthru
          _
        // Predicated region
        $region17: #{tpu_custom_call.1} parent=11 // pred_check
          %p186 = pneg %p98
        $region18: #{tpu_custom_call.1} parent=11 // pred_check_branch
          %188 = sbr.rel (%p186) target = $region20
        $region19: #{tpu_custom_call.1} parent=11 // pred_region
          _
        $region20: #{tpu_custom_call.1} parent=11 // pred_fallthru
          _
        // Predicated region
        $region21: #{tpu_custom_call.1} parent=11 // pred_check
          %p189 = pneg %p119
        $region22: #{tpu_custom_call.1} parent=11 // pred_check_branch
          %191 = sbr.rel (%p189) target = $region24
        $region23: #{tpu_custom_call.1} parent=11 // pred_region
          _
        $region24: #{tpu_custom_call.1} parent=11 // pred_fallthru
          _
        // Predicated region
        $region25: #{tpu_custom_call.1} parent=11 // pred_check
          %p192 = pneg %p140
        $region26: #{tpu_custom_call.1} parent=11 // pred_check_branch
          %194 = sbr.rel (%p192) target = $region28
        $region27: #{tpu_custom_call.1} parent=11 // pred_region
          _
        $region28: #{tpu_custom_call.1} parent=11 // pred_fallthru
          _
      $region12: #{tpu_custom_call.1} parent=5 // pred_fallthru
        _
      %p195 = scmp.lt.s32.totalorder %s14, 4
      // Predicated region
      $region29: #{tpu_custom_call.1} parent=5 // pred_check
        %p196 = pneg %p195
      $region30: #{tpu_custom_call.1} parent=5 // pred_check_branch
        %198 = sbr.rel (%p196) target = $region32
      $region31: #{tpu_custom_call.1} parent=5 // pred_region
        // Predicated region
        $region33: #{tpu_custom_call.1} parent=31 // pred_check
          %p199 = pneg %p50
        $region34: #{tpu_custom_call.1} parent=31 // pred_check_branch
          %201 = sbr.rel (%p199) target = $region36
        $region35: #{tpu_custom_call.1} parent=31 // pred_region
          %s202 = smul.u32 %s21, 2
          %s203 = sadd.s32 %s202, %s22
          %p204 = scmp.lt.s32.totalorder %s203, 3
          %s205 = scalar_select %p204, %s203, 3
          %s206 = smul.addr %s205, 36
          %s207 = smul.addr %s206, 8
          %s208 = scalar_lea.vmem %s0, %s207
          %s209 = smul.u32 %s21, 2
          %s210 = sadd.s32 %s209, %s22
        $region36: #{tpu_custom_call.1} parent=31 // pred_fallthru
          _
      $region32: #{tpu_custom_call.1} parent=5 // pred_fallthru
        _
      %p211 = scmp.le.s32.totalorder 1, %s14
      %p212 = scmp.lt.s32.totalorder %s14, 5
      %p213 = pnand %p211, %p212
      %p214 = pneg %p213
      // Predicated region
      $region37: #{tpu_custom_call.1} parent=5 // pred_check
        _
      $region38: #{tpu_custom_call.1} parent=5 // pred_check_branch
        %216 = sbr.rel (%p213) target = $region40
      $region39: #{tpu_custom_call.1} parent=5 // pred_region
        %s217 = ssub.s32 %s14, 1
        %s218 = smul.u32 %s23, 2
        %s219 = sadd.s32 %s218, %s24
        %p220 = scmp.lt.s32.totalorder %s219, 3
        %s221 = scalar_select %p220, %s219, 3
        %s222 = smul.addr %s221, 36
        %s223 = smul.addr %s222, 8
        %s224 = scalar_lea.vmem %s0, %s223
        %p225 = pneg %p56
        %p226 = pneg %p53
        %p227 = pneg %p77
        %p228 = pneg %p74
        %p229 = pneg %p98
        %p230 = pneg %p95
        %p231 = pneg %p119
        %p232 = pneg %p116
        %p233 = pneg %p140
        %p234 = pneg %p137
        %p235 = pneg %p168
        %p236 = pneg %p165
        %s237 = sand.u32 %s155, 1
        %s238 = scalar_lea.sflag [#allocation4], %s237
        %s239 = sand.u32 %s155, 1
        %s240 = smul.addr %s239, 128
        %s241 = scalar_lea.vmem [#allocation3], %s240
        %s242 = smul.u32 %s23, 2
        %s243 = sadd.s32 %s242, %s24
        %p244 = scmp.lt.s32.totalorder %s243, 3
        %s245 = scalar_select %p244, %s243, 3
        %s246 = smul.addr %s245, 36
        %s247 = smul.addr %s246, 8
        %s248 = scalar_lea.vmem %s0, %s247
        %s249 = smul.u32 %s23, 2
        %s250 = sadd.s32 %s249, %s24
        %s251 = smul.u32 8, %s24
        %v252 = vld [vmem:[%s248] sm:$0xff]
        %v253 = vld [vmem:[%s248 + $0x8] sm:$0xff]
        %v254 = vld [vmem:[%s248 + $0x10] sm:$0x3]
        %v255 = vld [vmem:[%s248 + $0x18] sm:$0xff]
        %v256 = vld [vmem:[%s248 + $0x20] sm:$0xff]
        %v257 = vld [vmem:[%s248 + $0x28] sm:$0x3]
        %v258 = vld [vmem:[%s248 + $0x30] sm:$0xff]
        %v259 = vld [vmem:[%s248 + $0x38] sm:$0xff]
        %v260 = vld [vmem:[%s248 + $0x40] sm:$0x3]
        %v261 = vld [vmem:[%s248 + $0x48] sm:$0xff]
        %v262 = vld [vmem:[%s248 + $0x50] sm:$0xff]
        %v263 = vld [vmem:[%s248 + $0x58] sm:$0x3]
        %v264 = vld [vmem:[%s248 + $0x60] sm:$0xff]
        %v265 = vld [vmem:[%s248 + $0x68] sm:$0xff]
        %v266 = vld [vmem:[%s248 + $0x70] sm:$0x3]
        %v267 = vld [vmem:[%s248 + $0x78] sm:$0xff]
        %v268 = vld [vmem:[%s248 + $0x80] sm:$0xff]
        %v269 = vld [vmem:[%s248 + $0x88] sm:$0x3]
        %v270 = vld [vmem:[%s248 + $0x90] sm:$0xff]
        %v271 = vld [vmem:[%s248 + $0x98] sm:$0xff]
        %v272 = vld [vmem:[%s248 + $0xa0] sm:$0x3]
        %v273 = vld [vmem:[%s248 + $0xa8] sm:$0xff]
        %v274 = vld [vmem:[%s248 + $0xb0] sm:$0xff]
        %v275 = vld [vmem:[%s248 + $0xb8] sm:$0x3]
        %v276 = vld [vmem:[%s248 + $0xc0] sm:$0xff]
        %v277 = vld [vmem:[%s248 + $0xc8] sm:$0xff]
        %v278 = vld [vmem:[%s248 + $0xd0] sm:$0x3]
        %v279 = vld [vmem:[%s248 + $0xd8] sm:$0xff]
        %v280 = vld [vmem:[%s248 + $0xe0] sm:$0xff]
        %v281 = vld [vmem:[%s248 + $0xe8] sm:$0x3]
        %v282 = vld [vmem:[%s248 + $0xf0] sm:$0xff]
        %v283 = vld [vmem:[%s248 + $0xf8] sm:$0xff]
        %v284 = vld [vmem:[%s248 + $0x100] sm:$0x3]
        %v285 = vld [vmem:[%s248 + $0x108] sm:$0xff]
        %v286 = vld [vmem:[%s248 + $0x110] sm:$0xff]
        %v287 = vld [vmem:[%s248 + $0x118] sm:$0x3]
        %vm318 = vcmask 1046528
        %v319 = vrot.slane %v252, 1
        %v320 = vrot.slane %v253, 1
        %v321 = vsel %vm318, %v319, %v320
        %v322 = vrot.slane %v254, 1
        %v323 = vsel %vm318, %v320, %v322
        %v324 = vrot.slane %v255, 1
        %v325 = vrot.slane %v256, 1
        %v326 = vsel %vm318, %v324, %v325
        %v327 = vrot.slane %v257, 1
        %v328 = vsel %vm318, %v325, %v327
        %v329 = vrot.slane %v258, 1
        %v330 = vrot.slane %v259, 1
        %v331 = vsel %vm318, %v329, %v330
        %v332 = vrot.slane %v260, 1
        %v333 = vsel %vm318, %v330, %v332
        %v334 = vrot.slane %v261, 1
        %v335 = vrot.slane %v262, 1
        %v336 = vsel %vm318, %v334, %v335
        %v337 = vrot.slane %v263, 1
        %v338 = vsel %vm318, %v335, %v337
        %v339 = vrot.slane %v264, 1
        %v340 = vrot.slane %v265, 1
        %v341 = vsel %vm318, %v339, %v340
        %v342 = vrot.slane %v266, 1
        %v343 = vsel %vm318, %v340, %v342
        %v344 = vrot.slane %v267, 1
        %v345 = vrot.slane %v268, 1
        %v346 = vsel %vm318, %v344, %v345
        %v347 = vrot.slane %v269, 1
        %v348 = vsel %vm318, %v345, %v347
        %v349 = vrot.slane %v270, 1
        %v350 = vrot.slane %v271, 1
        %v351 = vsel %vm318, %v349, %v350
        %v352 = vrot.slane %v272, 1
        %v353 = vsel %vm318, %v350, %v352
        %v354 = vrot.slane %v273, 1
        %v355 = vrot.slane %v274, 1
        %v356 = vsel %vm318, %v354, %v355
        %v357 = vrot.slane %v275, 1
        %v358 = vsel %vm318, %v355, %v357
        %v359 = vrot.slane %v276, 1
        %v360 = vrot.slane %v277, 1
        %v361 = vsel %vm318, %v359, %v360
        %v362 = vrot.slane %v278, 1
        %v363 = vsel %vm318, %v360, %v362
        %v364 = vrot.slane %v279, 1
        %v365 = vrot.slane %v280, 1
        %v366 = vsel %vm318, %v364, %v365
        %v367 = vrot.slane %v281, 1
        %v368 = vsel %vm318, %v365, %v367
        %369 = vrot.lane.b32.xlu0 %v321, 4
        %v370 = vpop.permute.xlu0 %369
        %371 = vrot.lane.b32.xlu0 %v323, 4
        %v372 = vpop.permute.xlu0 %371
        %373 = vrot.lane.b32.xlu0 %v326, 4
        %v374 = vpop.permute.xlu0 %373
        %375 = vrot.lane.b32.xlu0 %v328, 4
        %v376 = vpop.permute.xlu0 %375
        %377 = vrot.lane.b32.xlu0 %v331, 4
        %v378 = vpop.permute.xlu0 %377
        %379 = vrot.lane.b32.xlu0 %v333, 4
        %v380 = vpop.permute.xlu0 %379
        %381 = vrot.lane.b32.xlu0 %v336, 4
        %v382 = vpop.permute.xlu0 %381
        %383 = vrot.lane.b32.xlu0 %v338, 4
        %v384 = vpop.permute.xlu0 %383
        %385 = vrot.lane.b32.xlu0 %v341, 4
        %v386 = vpop.permute.xlu0 %385
        %387 = vrot.lane.b32.xlu0 %v343, 4
        %v388 = vpop.permute.xlu0 %387
        %389 = vrot.lane.b32.xlu0 %v346, 4
        %v390 = vpop.permute.xlu0 %389
        %391 = vrot.lane.b32.xlu0 %v348, 4
        %v392 = vpop.permute.xlu0 %391
        %393 = vrot.lane.b32.xlu0 %v351, 4
        %v394 = vpop.permute.xlu0 %393
        %395 = vrot.lane.b32.xlu0 %v353, 4
        %v396 = vpop.permute.xlu0 %395
        %397 = vrot.lane.b32.xlu0 %v356, 4
        %v398 = vpop.permute.xlu0 %397
        %399 = vrot.lane.b32.xlu0 %v358, 4
        %v400 = vpop.permute.xlu0 %399
        %401 = vrot.lane.b32.xlu0 %v361, 4
        %v402 = vpop.permute.xlu0 %401
        %403 = vrot.lane.b32.xlu0 %v363, 4
        %v404 = vpop.permute.xlu0 %403
        %405 = vrot.lane.b32.xlu0 %v366, 4
        %v406 = vpop.permute.xlu0 %405
        %407 = vrot.lane.b32.xlu0 %v368, 4
        %v408 = vpop.permute.xlu0 %407
        %vm429 = vcmask 1045504
        %v430 = vrot.slane %v252, 2
        %v431 = vrot.slane %v253, 2
        %v432 = vsel %vm429, %v430, %v431
        %v433 = vrot.slane %v254, 2
        %v434 = vsel %vm429, %v431, %v433
        %v435 = vrot.slane %v255, 2
        %v436 = vrot.slane %v256, 2
        %v437 = vsel %vm429, %v435, %v436
        %v438 = vrot.slane %v257, 2
        %v439 = vsel %vm429, %v436, %v438
        %v440 = vrot.slane %v258, 2
        %v441 = vrot.slane %v259, 2
        %v442 = vsel %vm429, %v440, %v441
        %v443 = vrot.slane %v260, 2
        %v444 = vsel %vm429, %v441, %v443
        %v445 = vrot.slane %v261, 2
        %v446 = vrot.slane %v262, 2
        %v447 = vsel %vm429, %v445, %v446
        %v448 = vrot.slane %v263, 2
        %v449 = vsel %vm429, %v446, %v448
        %v450 = vrot.slane %v264, 2
        %v451 = vrot.slane %v265, 2
        %v452 = vsel %vm429, %v450, %v451
        %v453 = vrot.slane %v266, 2
        %v454 = vsel %vm429, %v451, %v453
        %v455 = vrot.slane %v267, 2
        %v456 = vrot.slane %v268, 2
        %v457 = vsel %vm429, %v455, %v456
        %v458 = vrot.slane %v269, 2
        %v459 = vsel %vm429, %v456, %v458
        %v460 = vrot.slane %v270, 2
        %v461 = vrot.slane %v271, 2
        %v462 = vsel %vm429, %v460, %v461
        %v463 = vrot.slane %v272, 2
        %v464 = vsel %vm429, %v461, %v463
        %v465 = vrot.slane %v273, 2
        %v466 = vrot.slane %v274, 2
        %v467 = vsel %vm429, %v465, %v466
        %v468 = vrot.slane %v275, 2
        %v469 = vsel %vm429, %v466, %v468
        %v470 = vrot.slane %v276, 2
        %v471 = vrot.slane %v277, 2
        %v472 = vsel %vm429, %v470, %v471
        %v473 = vrot.slane %v278, 2
        %v474 = vsel %vm429, %v471, %v473
        %v475 = vrot.slane %v279, 2
        %v476 = vrot.slane %v280, 2
        %v477 = vsel %vm429, %v475, %v476
        %v478 = vrot.slane %v281, 2
        %v479 = vsel %vm429, %v476, %v478
        %480 = vrot.lane.b32.xlu0 %v432, 8
        %v481 = vpop.permute.xlu0 %480
        %482 = vrot.lane.b32.xlu0 %v434, 8
        %v483 = vpop.permute.xlu0 %482
        %484 = vrot.lane.b32.xlu0 %v437, 8
        %v485 = vpop.permute.xlu0 %484
        %486 = vrot.lane.b32.xlu0 %v439, 8
        %v487 = vpop.permute.xlu0 %486
        %488 = vrot.lane.b32.xlu0 %v442, 8
        %v489 = vpop.permute.xlu0 %488
        %490 = vrot.lane.b32.xlu0 %v444, 8
        %v491 = vpop.permute.xlu0 %490
        %492 = vrot.lane.b32.xlu0 %v447, 8
        %v493 = vpop.permute.xlu0 %492
        %494 = vrot.lane.b32.xlu0 %v449, 8
        %v495 = vpop.permute.xlu0 %494
        %496 = vrot.lane.b32.xlu0 %v452, 8
        %v497 = vpop.permute.xlu0 %496
        %498 = vrot.lane.b32.xlu0 %v454, 8
        %v499 = vpop.permute.xlu0 %498
        %500 = vrot.lane.b32.xlu0 %v457, 8
        %v501 = vpop.permute.xlu0 %500
        %502 = vrot.lane.b32.xlu0 %v459, 8
        %v503 = vpop.permute.xlu0 %502
        %504 = vrot.lane.b32.xlu0 %v462, 8
        %v505 = vpop.permute.xlu0 %504
        %506 = vrot.lane.b32.xlu0 %v464, 8
        %v507 = vpop.permute.xlu0 %506
        %508 = vrot.lane.b32.xlu0 %v467, 8
        %v509 = vpop.permute.xlu0 %508
        %510 = vrot.lane.b32.xlu0 %v469, 8
        %v511 = vpop.permute.xlu0 %510
        %512 = vrot.lane.b32.xlu0 %v472, 8
        %v513 = vpop.permute.xlu0 %512
        %514 = vrot.lane.b32.xlu0 %v474, 8
        %v515 = vpop.permute.xlu0 %514
        %516 = vrot.lane.b32.xlu0 %v477, 8
        %v517 = vpop.permute.xlu0 %516
        %518 = vrot.lane.b32.xlu0 %v479, 8
        %v519 = vpop.permute.xlu0 %518
        %542 = vrot.lane.b32.xlu0 %v255, 12
        %v543 = vpop.permute.xlu0 %542
        %544 = vrot.lane.b32.xlu0 %v256, 12
        %v545 = vpop.permute.xlu0 %544
        %546 = vrot.lane.b32.xlu0 %v258, 12
        %v547 = vpop.permute.xlu0 %546
        %548 = vrot.lane.b32.xlu0 %v259, 12
        %v549 = vpop.permute.xlu0 %548
        %550 = vrot.lane.b32.xlu0 %v261, 12
        %v551 = vpop.permute.xlu0 %550
        %552 = vrot.lane.b32.xlu0 %v262, 12
        %v553 = vpop.permute.xlu0 %552
        %554 = vrot.lane.b32.xlu0 %v264, 12
        %v555 = vpop.permute.xlu0 %554
        %556 = vrot.lane.b32.xlu0 %v265, 12
        %v557 = vpop.permute.xlu0 %556
        %558 = vrot.lane.b32.xlu0 %v267, 12
        %v559 = vpop.permute.xlu0 %558
        %560 = vrot.lane.b32.xlu0 %v268, 12
        %v561 = vpop.permute.xlu0 %560
        %562 = vrot.lane.b32.xlu0 %v270, 12
        %v563 = vpop.permute.xlu0 %562
        %564 = vrot.lane.b32.xlu0 %v271, 12
        %v565 = vpop.permute.xlu0 %564
        %566 = vrot.lane.b32.xlu0 %v273, 12
        %v567 = vpop.permute.xlu0 %566
        %568 = vrot.lane.b32.xlu0 %v274, 12
        %v569 = vpop.permute.xlu0 %568
        %570 = vrot.lane.b32.xlu0 %v276, 12
        %v571 = vpop.permute.xlu0 %570
        %572 = vrot.lane.b32.xlu0 %v277, 12
        %v573 = vpop.permute.xlu0 %572
        %574 = vrot.lane.b32.xlu0 %v279, 12
        %v575 = vpop.permute.xlu0 %574
        %576 = vrot.lane.b32.xlu0 %v280, 12
        %v577 = vpop.permute.xlu0 %576
        %578 = vrot.lane.b32.xlu0 %v282, 12
        %v579 = vpop.permute.xlu0 %578
        %580 = vrot.lane.b32.xlu0 %v283, 12
        %v581 = vpop.permute.xlu0 %580
        %v603 = vrot.slane %v282, 1
        %v604 = vrot.slane %v283, 1
        %v605 = vsel %vm318, %v603, %v604
        %v606 = vrot.slane %v284, 1
        %v607 = vsel %vm318, %v604, %v606
        %608 = vrot.lane.b32.xlu0 %v326, 16
        %v609 = vpop.permute.xlu0 %608
        %610 = vrot.lane.b32.xlu0 %v328, 16
        %v611 = vpop.permute.xlu0 %610
        %612 = vrot.lane.b32.xlu0 %v331, 16
        %v613 = vpop.permute.xlu0 %612
        %614 = vrot.lane.b32.xlu0 %v333, 16
        %v615 = vpop.permute.xlu0 %614
        %616 = vrot.lane.b32.xlu0 %v336, 16
        %v617 = vpop.permute.xlu0 %616
        %618 = vrot.lane.b32.xlu0 %v338, 16
        %v619 = vpop.permute.xlu0 %618
        %620 = vrot.lane.b32.xlu0 %v341, 16
        %v621 = vpop.permute.xlu0 %620
        %622 = vrot.lane.b32.xlu0 %v343, 16
        %v623 = vpop.permute.xlu0 %622
        %624 = vrot.lane.b32.xlu0 %v346, 16
        %v625 = vpop.permute.xlu0 %624
        %626 = vrot.lane.b32.xlu0 %v348, 16
        %v627 = vpop.permute.xlu0 %626
        %628 = vrot.lane.b32.xlu0 %v351, 16
        %v629 = vpop.permute.xlu0 %628
        %630 = vrot.lane.b32.xlu0 %v353, 16
        %v631 = vpop.permute.xlu0 %630
        %632 = vrot.lane.b32.xlu0 %v356, 16
        %v633 = vpop.permute.xlu0 %632
        %634 = vrot.lane.b32.xlu0 %v358, 16
        %v635 = vpop.permute.xlu0 %634
        %636 = vrot.lane.b32.xlu0 %v361, 16
        %v637 = vpop.permute.xlu0 %636
        %638 = vrot.lane.b32.xlu0 %v363, 16
        %v639 = vpop.permute.xlu0 %638
        %640 = vrot.lane.b32.xlu0 %v366, 16
        %v641 = vpop.permute.xlu0 %640
        %642 = vrot.lane.b32.xlu0 %v368, 16
        %v643 = vpop.permute.xlu0 %642
        %644 = vrot.lane.b32.xlu0 %v605, 16
        %v645 = vpop.permute.xlu0 %644
        %646 = vrot.lane.b32.xlu0 %v607, 16
        %v647 = vpop.permute.xlu0 %646
        %v668 = vrot.slane %v282, 2
        %v669 = vrot.slane %v283, 2
        %v670 = vsel %vm429, %v668, %v669
        %v671 = vrot.slane %v284, 2
        %v672 = vsel %vm429, %v669, %v671
        %673 = vrot.lane.b32.xlu0 %v437, 20
        %v674 = vpop.permute.xlu0 %673
        %675 = vrot.lane.b32.xlu0 %v439, 20
        %v676 = vpop.permute.xlu0 %675
        %677 = vrot.lane.b32.xlu0 %v442, 20
        %v678 = vpop.permute.xlu0 %677
        %679 = vrot.lane.b32.xlu0 %v444, 20
        %v680 = vpop.permute.xlu0 %679
        %681 = vrot.lane.b32.xlu0 %v447, 20
        %v682 = vpop.permute.xlu0 %681
        %683 = vrot.lane.b32.xlu0 %v449, 20
        %v684 = vpop.permute.xlu0 %683
        %685 = vrot.lane.b32.xlu0 %v452, 20
        %v686 = vpop.permute.xlu0 %685
        %687 = vrot.lane.b32.xlu0 %v454, 20
        %v688 = vpop.permute.xlu0 %687
        %689 = vrot.lane.b32.xlu0 %v457, 20
        %v690 = vpop.permute.xlu0 %689
        %691 = vrot.lane.b32.xlu0 %v459, 20
        %v692 = vpop.permute.xlu0 %691
        %693 = vrot.lane.b32.xlu0 %v462, 20
        %v694 = vpop.permute.xlu0 %693
        %695 = vrot.lane.b32.xlu0 %v464, 20
        %v696 = vpop.permute.xlu0 %695
        %697 = vrot.lane.b32.xlu0 %v467, 20
        %v698 = vpop.permute.xlu0 %697
        %699 = vrot.lane.b32.xlu0 %v469, 20
        %v700 = vpop.permute.xlu0 %699
        %701 = vrot.lane.b32.xlu0 %v472, 20
        %v702 = vpop.permute.xlu0 %701
        %703 = vrot.lane.b32.xlu0 %v474, 20
        %v704 = vpop.permute.xlu0 %703
        %705 = vrot.lane.b32.xlu0 %v477, 20
        %v706 = vpop.permute.xlu0 %705
        %707 = vrot.lane.b32.xlu0 %v479, 20
        %v708 = vpop.permute.xlu0 %707
        %709 = vrot.lane.b32.xlu0 %v670, 20
        %v710 = vpop.permute.xlu0 %709
        %711 = vrot.lane.b32.xlu0 %v672, 20
        %v712 = vpop.permute.xlu0 %711
        %735 = vrot.lane.b32.xlu0 %v258, 24
        %v736 = vpop.permute.xlu0 %735
        %737 = vrot.lane.b32.xlu0 %v259, 24
        %v738 = vpop.permute.xlu0 %737
        %739 = vrot.lane.b32.xlu0 %v261, 24
        %v740 = vpop.permute.xlu0 %739
        %741 = vrot.lane.b32.xlu0 %v262, 24
        %v742 = vpop.permute.xlu0 %741
        %743 = vrot.lane.b32.xlu0 %v264, 24
        %v744 = vpop.permute.xlu0 %743
        %745 = vrot.lane.b32.xlu0 %v265, 24
        %v746 = vpop.permute.xlu0 %745
        %747 = vrot.lane.b32.xlu0 %v267, 24
        %v748 = vpop.permute.xlu0 %747
        %749 = vrot.lane.b32.xlu0 %v268, 24
        %v750 = vpop.permute.xlu0 %749
        %751 = vrot.lane.b32.xlu0 %v270, 24
        %v752 = vpop.permute.xlu0 %751
        %753 = vrot.lane.b32.xlu0 %v271, 24
        %v754 = vpop.permute.xlu0 %753
        %755 = vrot.lane.b32.xlu0 %v273, 24
        %v756 = vpop.permute.xlu0 %755
        %757 = vrot.lane.b32.xlu0 %v274, 24
        %v758 = vpop.permute.xlu0 %757
        %759 = vrot.lane.b32.xlu0 %v276, 24
        %v760 = vpop.permute.xlu0 %759
        %761 = vrot.lane.b32.xlu0 %v277, 24
        %v762 = vpop.permute.xlu0 %761
        %763 = vrot.lane.b32.xlu0 %v279, 24
        %v764 = vpop.permute.xlu0 %763
        %765 = vrot.lane.b32.xlu0 %v280, 24
        %v766 = vpop.permute.xlu0 %765
        %767 = vrot.lane.b32.xlu0 %v282, 24
        %v768 = vpop.permute.xlu0 %767
        %769 = vrot.lane.b32.xlu0 %v283, 24
        %v770 = vpop.permute.xlu0 %769
        %771 = vrot.lane.b32.xlu0 %v285, 24
        %v772 = vpop.permute.xlu0 %771
        %773 = vrot.lane.b32.xlu0 %v286, 24
        %v774 = vpop.permute.xlu0 %773
        %v796 = vrot.slane %v285, 1
        %v797 = vrot.slane %v286, 1
        %v798 = vsel %vm318, %v796, %v797
        %v799 = vrot.slane %v287, 1
        %v800 = vsel %vm318, %v797, %v799
        %801 = vrot.lane.b32.xlu0 %v331, 28
        %v802 = vpop.permute.xlu0 %801
        %803 = vrot.lane.b32.xlu0 %v333, 28
        %v804 = vpop.permute.xlu0 %803
        %805 = vrot.lane.b32.xlu0 %v336, 28
        %v806 = vpop.permute.xlu0 %805
        %807 = vrot.lane.b32.xlu0 %v338, 28
        %v808 = vpop.permute.xlu0 %807
        %809 = vrot.lane.b32.xlu0 %v341, 28
        %v810 = vpop.permute.xlu0 %809
        %811 = vrot.lane.b32.xlu0 %v343, 28
        %v812 = vpop.permute.xlu0 %811
        %813 = vrot.lane.b32.xlu0 %v346, 28
        %v814 = vpop.permute.xlu0 %813
        %815 = vrot.lane.b32.xlu0 %v348, 28
        %v816 = vpop.permute.xlu0 %815
        %817 = vrot.lane.b32.xlu0 %v351, 28
        %v818 = vpop.permute.xlu0 %817
        %819 = vrot.lane.b32.xlu0 %v353, 28
        %v820 = vpop.permute.xlu0 %819
        %821 = vrot.lane.b32.xlu0 %v356, 28
        %v822 = vpop.permute.xlu0 %821
        %823 = vrot.lane.b32.xlu0 %v358, 28
        %v824 = vpop.permute.xlu0 %823
        %825 = vrot.lane.b32.xlu0 %v361, 28
        %v826 = vpop.permute.xlu0 %825
        %827 = vrot.lane.b32.xlu0 %v363, 28
        %v828 = vpop.permute.xlu0 %827
        %829 = vrot.lane.b32.xlu0 %v366, 28
        %v830 = vpop.permute.xlu0 %829
        %831 = vrot.lane.b32.xlu0 %v368, 28
        %v832 = vpop.permute.xlu0 %831
        %833 = vrot.lane.b32.xlu0 %v605, 28
        %v834 = vpop.permute.xlu0 %833
        %835 = vrot.lane.b32.xlu0 %v607, 28
        %v836 = vpop.permute.xlu0 %835
        %837 = vrot.lane.b32.xlu0 %v798, 28
        %v838 = vpop.permute.xlu0 %837
        %839 = vrot.lane.b32.xlu0 %v800, 28
        %v840 = vpop.permute.xlu0 %839
        %v861 = vrot.slane %v285, 2
        %v862 = vrot.slane %v286, 2
        %v863 = vsel %vm429, %v861, %v862
        %v864 = vrot.slane %v287, 2
        %v865 = vsel %vm429, %v862, %v864
        %866 = vrot.lane.b32.xlu0 %v442, 32
        %v867 = vpop.permute.xlu0 %866
        %868 = vrot.lane.b32.xlu0 %v444, 32
        %v869 = vpop.permute.xlu0 %868
        %870 = vrot.lane.b32.xlu0 %v447, 32
        %v871 = vpop.permute.xlu0 %870
        %872 = vrot.lane.b32.xlu0 %v449, 32
        %v873 = vpop.permute.xlu0 %872
        %874 = vrot.lane.b32.xlu0 %v452, 32
        %v875 = vpop.permute.xlu0 %874
        %876 = vrot.lane.b32.xlu0 %v454, 32
        %v877 = vpop.permute.xlu0 %876
        %878 = vrot.lane.b32.xlu0 %v457, 32
        %v879 = vpop.permute.xlu0 %878
        %880 = vrot.lane.b32.xlu0 %v459, 32
        %v881 = vpop.permute.xlu0 %880
        %882 = vrot.lane.b32.xlu0 %v462, 32
        %v883 = vpop.permute.xlu0 %882
        %884 = vrot.lane.b32.xlu0 %v464, 32
        %v885 = vpop.permute.xlu0 %884
        %886 = vrot.lane.b32.xlu0 %v467, 32
        %v887 = vpop.permute.xlu0 %886
        %888 = vrot.lane.b32.xlu0 %v469, 32
        %v889 = vpop.permute.xlu0 %888
        %890 = vrot.lane.b32.xlu0 %v472, 32
        %v891 = vpop.permute.xlu0 %890
        %892 = vrot.lane.b32.xlu0 %v474, 32
        %v893 = vpop.permute.xlu0 %892
        %894 = vrot.lane.b32.xlu0 %v477, 32
        %v895 = vpop.permute.xlu0 %894
        %896 = vrot.lane.b32.xlu0 %v479, 32
        %v897 = vpop.permute.xlu0 %896
        %898 = vrot.lane.b32.xlu0 %v670, 32
        %v899 = vpop.permute.xlu0 %898
        %900 = vrot.lane.b32.xlu0 %v672, 32
        %v901 = vpop.permute.xlu0 %900
        %902 = vrot.lane.b32.xlu0 %v863, 32
        %v903 = vpop.permute.xlu0 %902
        %904 = vrot.lane.b32.xlu0 %v865, 32
        %v905 = vpop.permute.xlu0 %904
        %vm926 = vcmask 31744
        %v927 = vsel %vm926, %v252, %v370
        %v928 = vsel %vm926, %v253, %v372
        %v929 = vsel %vm926, %v255, %v374
        %v930 = vsel %vm926, %v256, %v376
        %v931 = vsel %vm926, %v258, %v378
        %v932 = vsel %vm926, %v259, %v380
        %v933 = vsel %vm926, %v261, %v382
        %v934 = vsel %vm926, %v262, %v384
        %v935 = vsel %vm926, %v264, %v386
        %v936 = vsel %vm926, %v265, %v388
        %v937 = vsel %vm926, %v267, %v390
        %v938 = vsel %vm926, %v268, %v392
        %v939 = vsel %vm926, %v270, %v394
        %v940 = vsel %vm926, %v271, %v396
        %v941 = vsel %vm926, %v273, %v398
        %v942 = vsel %vm926, %v274, %v400
        %v943 = vsel %vm926, %v276, %v402
        %v944 = vsel %vm926, %v277, %v404
        %v945 = vsel %vm926, %v279, %v406
        %v946 = vsel %vm926, %v280, %v408
        %vm947 = vcmask 64512
        %v948 = vsel %vm947, %v927, %v481
        %v949 = vsel %vm947, %v928, %v483
        %v950 = vsel %vm947, %v929, %v485
        %v951 = vsel %vm947, %v930, %v487
        %v952 = vsel %vm947, %v931, %v489
        %v953 = vsel %vm947, %v932, %v491
        %v954 = vsel %vm947, %v933, %v493
        %v955 = vsel %vm947, %v934, %v495
        %v956 = vsel %vm947, %v935, %v497
        %v957 = vsel %vm947, %v936, %v499
        %v958 = vsel %vm947, %v937, %v501
        %v959 = vsel %vm947, %v938, %v503
        %v960 = vsel %vm947, %v939, %v505
        %v961 = vsel %vm947, %v940, %v507
        %v962 = vsel %vm947, %v941, %v509
        %v963 = vsel %vm947, %v942, %v511
        %v964 = vsel %vm947, %v943, %v513
        %v965 = vsel %vm947, %v944, %v515
        %v966 = vsel %vm947, %v945, %v517
        %v967 = vsel %vm947, %v946, %v519
        %vm968 = vcmask 97280
        %v969 = vsel %vm968, %v948, %v543
        %v970 = vsel %vm968, %v949, %v545
        %v971 = vsel %vm968, %v950, %v547
        %v972 = vsel %vm968, %v951, %v549
        %v973 = vsel %vm968, %v952, %v551
        %v974 = vsel %vm968, %v953, %v553
        %v975 = vsel %vm968, %v954, %v555
        %v976 = vsel %vm968, %v955, %v557
        %v977 = vsel %vm968, %v956, %v559
        %v978 = vsel %vm968, %v957, %v561
        %v979 = vsel %vm968, %v958, %v563
        %v980 = vsel %vm968, %v959, %v565
        %v981 = vsel %vm968, %v960, %v567
        %v982 = vsel %vm968, %v961, %v569
        %v983 = vsel %vm968, %v962, %v571
        %v984 = vsel %vm968, %v963, %v573
        %v985 = vsel %vm968, %v964, %v575
        %v986 = vsel %vm968, %v965, %v577
        %v987 = vsel %vm968, %v966, %v579
        %v988 = vsel %vm968, %v967, %v581
        %vm989 = vcmask 130048
        %v990 = vsel %vm989, %v969, %v609
        %v991 = vsel %vm989, %v970, %v611
        %v992 = vsel %vm989, %v971, %v613
        %v993 = vsel %vm989, %v972, %v615
        %v994 = vsel %vm989, %v973, %v617
        %v995 = vsel %vm989, %v974, %v619
        %v996 = vsel %vm989, %v975, %v621
        %v997 = vsel %vm989, %v976, %v623
        %v998 = vsel %vm989, %v977, %v625
        %v999 = vsel %vm989, %v978, %v627
        %v1000 = vsel %vm989, %v979, %v629
        %v1001 = vsel %vm989, %v980, %v631
        %v1002 = vsel %vm989, %v981, %v633
        %v1003 = vsel %vm989, %v982, %v635
        %v1004 = vsel %vm989, %v983, %v637
        %v1005 = vsel %vm989, %v984, %v639
        %v1006 = vsel %vm989, %v985, %v641
        %v1007 = vsel %vm989, %v986, %v643
        %v1008 = vsel %vm989, %v987, %v645
        %v1009 = vsel %vm989, %v988, %v647
        %vm1010 = vcmask 162816
        %v1011 = vsel %vm1010, %v990, %v674
        %v1012 = vsel %vm1010, %v991, %v676
        %v1013 = vsel %vm1010, %v992, %v678
        %v1014 = vsel %vm1010, %v993, %v680
        %v1015 = vsel %vm1010, %v994, %v682
        %v1016 = vsel %vm1010, %v995, %v684
        %v1017 = vsel %vm1010, %v996, %v686
        %v1018 = vsel %vm1010, %v997, %v688
        %v1019 = vsel %vm1010, %v998, %v690
        %v1020 = vsel %vm1010, %v999, %v692
        %v1021 = vsel %vm1010, %v1000, %v694
        %v1022 = vsel %vm1010, %v1001, %v696
        %v1023 = vsel %vm1010, %v1002, %v698
        %v1024 = vsel %vm1010, %v1003, %v700
        %v1025 = vsel %vm1010, %v1004, %v702
        %v1026 = vsel %vm1010, %v1005, %v704
        %v1027 = vsel %vm1010, %v1006, %v706
        %v1028 = vsel %vm1010, %v1007, %v708
        %v1029 = vsel %vm1010, %v1008, %v710
        %v1030 = vsel %vm1010, %v1009, %v712
        %vm1031 = vcmask 195584
        %v1032 = vsel %vm1031, %v1011, %v736
        %v1033 = vsel %vm1031, %v1012, %v738
        %v1034 = vsel %vm1031, %v1013, %v740
        %v1035 = vsel %vm1031, %v1014, %v742
        %v1036 = vsel %vm1031, %v1015, %v744
        %v1037 = vsel %vm1031, %v1016, %v746
        %v1038 = vsel %vm1031, %v1017, %v748
        %v1039 = vsel %vm1031, %v1018, %v750
        %v1040 = vsel %vm1031, %v1019, %v752
        %v1041 = vsel %vm1031, %v1020, %v754
        %v1042 = vsel %vm1031, %v1021, %v756
        %v1043 = vsel %vm1031, %v1022, %v758
        %v1044 = vsel %vm1031, %v1023, %v760
        %v1045 = vsel %vm1031, %v1024, %v762
        %v1046 = vsel %vm1031, %v1025, %v764
        %v1047 = vsel %vm1031, %v1026, %v766
        %v1048 = vsel %vm1031, %v1027, %v768
        %v1049 = vsel %vm1031, %v1028, %v770
        %v1050 = vsel %vm1031, %v1029, %v772
        %v1051 = vsel %vm1031, %v1030, %v774
        %vm1052 = vcmask 228352
        %v1053 = vsel %vm1052, %v1032, %v802
        %v1054 = vsel %vm1052, %v1033, %v804
        %v1055 = vsel %vm1052, %v1034, %v806
        %v1056 = vsel %vm1052, %v1035, %v808
        %v1057 = vsel %vm1052, %v1036, %v810
        %v1058 = vsel %vm1052, %v1037, %v812
        %v1059 = vsel %vm1052, %v1038, %v814
        %v1060 = vsel %vm1052, %v1039, %v816
        %v1061 = vsel %vm1052, %v1040, %v818
        %v1062 = vsel %vm1052, %v1041, %v820
        %v1063 = vsel %vm1052, %v1042, %v822
        %v1064 = vsel %vm1052, %v1043, %v824
        %v1065 = vsel %vm1052, %v1044, %v826
        %v1066 = vsel %vm1052, %v1045, %v828
        %v1067 = vsel %vm1052, %v1046, %v830
        %v1068 = vsel %vm1052, %v1047, %v832
        %v1069 = vsel %vm1052, %v1048, %v834
        %v1070 = vsel %vm1052, %v1049, %v836
        %v1071 = vsel %vm1052, %v1050, %v838
        %v1072 = vsel %vm1052, %v1051, %v840
        %vm1073 = vcmask 261120
        %v1074 = vsel %vm1073, %v1053, %v867
        %v1075 = vsel %vm1073, %v1054, %v869
        %v1076 = vsel %vm1073, %v1055, %v871
        %v1077 = vsel %vm1073, %v1056, %v873
        %v1078 = vsel %vm1073, %v1057, %v875
        %v1079 = vsel %vm1073, %v1058, %v877
        %v1080 = vsel %vm1073, %v1059, %v879
        %v1081 = vsel %vm1073, %v1060, %v881
        %v1082 = vsel %vm1073, %v1061, %v883
        %v1083 = vsel %vm1073, %v1062, %v885
        %v1084 = vsel %vm1073, %v1063, %v887
        %v1085 = vsel %vm1073, %v1064, %v889
        %v1086 = vsel %vm1073, %v1065, %v891
        %v1087 = vsel %vm1073, %v1066, %v893
        %v1088 = vsel %vm1073, %v1067, %v895
        %v1089 = vsel %vm1073, %v1068, %v897
        %v1090 = vsel %vm1073, %v1069, %v899
        %v1091 = vsel %vm1073, %v1070, %v901
        %v1092 = vsel %vm1073, %v1071, %v903
        %v1093 = vsel %vm1073, %v1072, %v905
        %v1094 = vld [vmem:[%s1] sm:$0xff]
        %v1095 = vld [vmem:[%s1 + $0x8] sm:$0xff]
        %v1096 = vld [vmem:[%s1 + $0x10] sm:$0xff]
        %v1097 = vld [vmem:[%s1 + $0x18] sm:$0xff]
        %v1098 = vld [vmem:[%s1 + $0x20] sm:$0xf]
        %v1099 = vld [vmem:[%s2] sm:$0x1]
        %v1101 = vperm.slane %v1099, 0
        %vm1103 = vcmask 293888
        %v1105 = vsel %vm1103, %v1074, 0
        %v1108 = vsel %vm1103, %v1075, 0
        %v1111 = vsel %vm1103, %v1076, 0
        %v1114 = vsel %vm1103, %v1077, 0
        %v1117 = vsel %vm1103, %v1078, 0
        %v1120 = vsel %vm1103, %v1079, 0
        %v1123 = vsel %vm1103, %v1080, 0
        %v1126 = vsel %vm1103, %v1081, 0
        %v1129 = vsel %vm1103, %v1082, 0
        %v1132 = vsel %vm1103, %v1083, 0
        %v1135 = vsel %vm1103, %v1084, 0
        %v1138 = vsel %vm1103, %v1085, 0
        %v1141 = vsel %vm1103, %v1086, 0
        %v1144 = vsel %vm1103, %v1087, 0
        %v1147 = vsel %vm1103, %v1088, 0
        %v1150 = vsel %vm1103, %v1089, 0
        %v1153 = vsel %vm1103, %v1090, 0
        %v1156 = vsel %vm1103, %v1091, 0
        %v1159 = vsel %vm1103, %v1092, 0
        %v1162 = vsel %vm1103, %v1093, 0
        %vm1164 = vcmask 1043456
        %v1166 = vsel %vm1164, %v1098, 0
        %1168 = vmatpush.msra.mxu0 0.0
        %1169 = vmatpush.msra.mxu0 0.0
        %1170 = vmatpush.msra.mxu0 0.0
        %1171 = vmatpush.msra.mxu0 0.0
        %1172 = vmatpush.msra.mxu0 0.0
        %1173 = vmatpush.msra.mxu0 0.0
        %1174 = vmatpush.msra.mxu0 0.0
        %1175 = vmatpush.msra.mxu0 0.0
        %1176 = vmatpush.msra.mxu0 0.0
        %1177 = vmatpush.msra.mxu0 0.0
        %1178 = vmatpush.msra.mxu0 0.0
        %1179 = vmatpush.msra.mxu0 %v1166
        %1180 = vmatpush.msra.mxu0 %v1097
        %1181 = vmatpush.msra.mxu0 %v1096
        %1182 = vmatpush.msra.mxu0 %v1095
        %1183 = vmatpush.msra.mxu0 %v1094
        %1184 = vmatmul.f32.gmra.mxu0 %v1105
        %v1185 = vpop.f32.mrf.mxu0
        %v1186 = vadd.f32 %v1101, %v1185
        %1187 = vmatmul.f32.gmra.mxu0 %v1108
        %v1188 = vpop.f32.mrf.mxu0
        %v1189 = vadd.f32 %v1101, %v1188
        %1190 = vmatmul.f32.gmra.mxu0 %v1111
        %v1191 = vpop.f32.mrf.mxu0
        %v1192 = vadd.f32 %v1101, %v1191
        %1193 = vmatmul.f32.gmra.mxu0 %v1114
        %v1194 = vpop.f32.mrf.mxu0
        %v1195 = vadd.f32 %v1101, %v1194
        %1196 = vmatmul.f32.gmra.mxu0 %v1117
        %v1197 = vpop.f32.mrf.mxu0
        %v1198 = vadd.f32 %v1101, %v1197
        %1199 = vmatmul.f32.gmra.mxu0 %v1120
        %v1200 = vpop.f32.mrf.mxu0
        %v1201 = vadd.f32 %v1101, %v1200
        %1202 = vmatmul.f32.gmra.mxu0 %v1123
        %v1203 = vpop.f32.mrf.mxu0
        %v1204 = vadd.f32 %v1101, %v1203
        %1205 = vmatmul.f32.gmra.mxu0 %v1126
        %v1206 = vpop.f32.mrf.mxu0
        %v1207 = vadd.f32 %v1101, %v1206
        %1208 = vmatmul.f32.gmra.mxu0 %v1129
        %v1209 = vpop.f32.mrf.mxu0
        %v1210 = vadd.f32 %v1101, %v1209
        %1211 = vmatmul.f32.gmra.mxu0 %v1132
        %v1212 = vpop.f32.mrf.mxu0
        %v1213 = vadd.f32 %v1101, %v1212
        %1214 = vmatmul.f32.gmra.mxu0 %v1135
        %v1215 = vpop.f32.mrf.mxu0
        %v1216 = vadd.f32 %v1101, %v1215
        %1217 = vmatmul.f32.gmra.mxu0 %v1138
        %v1218 = vpop.f32.mrf.mxu0
        %v1219 = vadd.f32 %v1101, %v1218
        %1220 = vmatmul.f32.gmra.mxu0 %v1141
        %v1221 = vpop.f32.mrf.mxu0
        %v1222 = vadd.f32 %v1101, %v1221
        %1223 = vmatmul.f32.gmra.mxu0 %v1144
        %v1224 = vpop.f32.mrf.mxu0
        %v1225 = vadd.f32 %v1101, %v1224
        %1226 = vmatmul.f32.gmra.mxu0 %v1147
        %v1227 = vpop.f32.mrf.mxu0
        %v1228 = vadd.f32 %v1101, %v1227
        %1229 = vmatmul.f32.gmra.mxu0 %v1150
        %v1230 = vpop.f32.mrf.mxu0
        %v1231 = vadd.f32 %v1101, %v1230
        %1232 = vmatmul.f32.gmra.mxu0 %v1153
        %v1233 = vpop.f32.mrf.mxu0
        %v1234 = vadd.f32 %v1101, %v1233
        %1235 = vmatmul.f32.gmra.mxu0 %v1156
        %v1236 = vpop.f32.mrf.mxu0
        %v1237 = vadd.f32 %v1101, %v1236
        %1238 = vmatmul.f32.gmra.mxu0 %v1159
        %v1239 = vpop.f32.mrf.mxu0
        %v1240 = vadd.f32 %v1101, %v1239
        %1241 = vmatmul.f32.gmra.mxu0 %v1162
        %v1242 = vpop.f32.mrf.mxu0
        %v1243 = vadd.f32 %v1101, %v1242
        %1244 = vdwg.mxu0
        %v1245 = vmax.f32 %v1186, 0.0
        %v1246 = vmax.f32 %v1189, 0.0
        %v1247 = vmax.f32 %v1192, 0.0
        %v1248 = vmax.f32 %v1195, 0.0
        %v1249 = vmax.f32 %v1198, 0.0
        %v1250 = vmax.f32 %v1201, 0.0
        %v1251 = vmax.f32 %v1204, 0.0
        %v1252 = vmax.f32 %v1207, 0.0
        %v1253 = vmax.f32 %v1210, 0.0
        %v1254 = vmax.f32 %v1213, 0.0
        %v1255 = vmax.f32 %v1216, 0.0
        %v1256 = vmax.f32 %v1219, 0.0
        %v1257 = vmax.f32 %v1222, 0.0
        %v1258 = vmax.f32 %v1225, 0.0
        %v1259 = vmax.f32 %v1228, 0.0
        %v1260 = vmax.f32 %v1231, 0.0
        %v1261 = vmax.f32 %v1234, 0.0
        %v1262 = vmax.f32 %v1237, 0.0
        %v1263 = vmax.f32 %v1240, 0.0
        %v1264 = vmax.f32 %v1243, 0.0
        %1265 = vst.msk [vmem:[#allocation2 + $0x1] sm:$0xff] %vm947, %v1245
        %1266 = vst.msk [vmem:[#allocation2 + $0x9] sm:$0xff] %vm947, %v1246
        %1267 = vst.msk [vmem:[#allocation2 + $0x19] sm:$0xff] %vm947, %v1247
        %1268 = vst.msk [vmem:[#allocation2 + $0x21] sm:$0xff] %vm947, %v1248
        %1269 = vst.msk [vmem:[#allocation2 + $0x31] sm:$0xff] %vm947, %v1249
        %1270 = vst.msk [vmem:[#allocation2 + $0x39] sm:$0xff] %vm947, %v1250
        %1271 = vst.msk [vmem:[#allocation2 + $0x49] sm:$0xff] %vm947, %v1251
        %1272 = vst.msk [vmem:[#allocation2 + $0x51] sm:$0xff] %vm947, %v1252
        %1273 = vst.msk [vmem:[#allocation2 + $0x61] sm:$0xff] %vm947, %v1253
        %1274 = vst.msk [vmem:[#allocation2 + $0x69] sm:$0xff] %vm947, %v1254
        %1275 = vst.msk [vmem:[#allocation2 + $0x79] sm:$0xff] %vm947, %v1255
        %1276 = vst.msk [vmem:[#allocation2 + $0x81] sm:$0xff] %vm947, %v1256
        %1277 = vst.msk [vmem:[#allocation2 + $0x91] sm:$0xff] %vm947, %v1257
        %1278 = vst.msk [vmem:[#allocation2 + $0x99] sm:$0xff] %vm947, %v1258
        %1279 = vst.msk [vmem:[#allocation2 + $0xa9] sm:$0xff] %vm947, %v1259
        %1280 = vst.msk [vmem:[#allocation2 + $0xb1] sm:$0xff] %vm947, %v1260
        %1281 = vst.msk [vmem:[#allocation2 + $0xc1] sm:$0xff] %vm947, %v1261
        %1282 = vst.msk [vmem:[#allocation2 + $0xc9] sm:$0xff] %vm947, %v1262
        %1283 = vst.msk [vmem:[#allocation2 + $0xd9] sm:$0xff] %vm947, %v1263
        %1284 = vst.msk [vmem:[#allocation2 + $0xe1] sm:$0xff] %vm947, %v1264
        %vm1285 = vcmask 57344
        %1286 = vst.msk [vmem:[#allocation2] sm:$0x1] %vm1285, 0.0
        %1287 = vst.msk [vmem:[#allocation2 + $0x18] sm:$0x1] %vm1285, 0.0
        %1288 = vst.msk [vmem:[#allocation2 + $0x30] sm:$0x1] %vm1285, 0.0
        %1289 = vst.msk [vmem:[#allocation2 + $0x48] sm:$0x1] %vm1285, 0.0
        %1290 = vst.msk [vmem:[#allocation2 + $0x60] sm:$0x1] %vm1285, 0.0
        %1291 = vst.msk [vmem:[#allocation2 + $0x78] sm:$0x1] %vm1285, 0.0
        %1292 = vst.msk [vmem:[#allocation2 + $0x90] sm:$0x1] %vm1285, 0.0
        %1293 = vst.msk [vmem:[#allocation2 + $0xa8] sm:$0x1] %vm1285, 0.0
        %1294 = vst.msk [vmem:[#allocation2 + $0xc0] sm:$0x1] %vm1285, 0.0
        %1295 = vst.msk [vmem:[#allocation2 + $0xd8] sm:$0x1] %vm1285, 0.0
        %1296 = vst.msk [vmem:[#allocation2 + $0x11] sm:$0x1] %vm1285, 0.0
        %1297 = vst.msk [vmem:[#allocation2 + $0x29] sm:$0x1] %vm1285, 0.0
        %1298 = vst.msk [vmem:[#allocation2 + $0x41] sm:$0x1] %vm1285, 0.0
        %1299 = vst.msk [vmem:[#allocation2 + $0x59] sm:$0x1] %vm1285, 0.0
        %1300 = vst.msk [vmem:[#allocation2 + $0x71] sm:$0x1] %vm1285, 0.0
        %1301 = vst.msk [vmem:[#allocation2 + $0x89] sm:$0x1] %vm1285, 0.0
        %1302 = vst.msk [vmem:[#allocation2 + $0xa1] sm:$0x1] %vm1285, 0.0
        %1303 = vst.msk [vmem:[#allocation2 + $0xb9] sm:$0x1] %vm1285, 0.0
        %1304 = vst.msk [vmem:[#allocation2 + $0xd1] sm:$0x1] %vm1285, 0.0
        %1305 = vst.msk [vmem:[#allocation2 + $0xe9] sm:$0x1] %vm1285, 0.0
        %p1306 = scmp.eq.s32.totalorder %s24, 0
        // Predicated region
        $region41: #{tpu_custom_call.1} parent=39 // pred_check
          %p1307 = pneg %p1306
        $region42: #{tpu_custom_call.1} parent=39 // pred_check_branch
          %1309 = sbr.rel (%p1307) target = $region44
        $region43: #{tpu_custom_call.1} parent=39 // pred_region
          %1310 = vst.msk [vmem:[#allocation2] sm:$0xff] %vm947, 0.0
          %1311 = vst.msk [vmem:[#allocation2 + $0x8] sm:$0xff] %vm947, 0.0
          %vm1312 = vcmask 58368
          %1313 = vst.msk [vmem:[#allocation2 + $0x10] sm:$0x3] %vm1312, 0.0
        $region44: #{tpu_custom_call.1} parent=39 // pred_fallthru
          _
        %p1314 = scmp.eq.s32.totalorder %s24, 1
        // Predicated region
        $region45: #{tpu_custom_call.1} parent=39 // pred_check
          %p1315 = pneg %p1314
        $region46: #{tpu_custom_call.1} parent=39 // pred_check_branch
          %1317 = sbr.rel (%p1315) target = $region48
        $region47: #{tpu_custom_call.1} parent=39 // pred_region
          %s1318 = scalar_lea.vmem [#allocation2], 216
          %1319 = vst.msk [vmem:[%s1318] sm:$0xff] %vm947, 0.0
          %1320 = vst.msk [vmem:[%s1318 + $0x8] sm:$0xff] %vm947, 0.0
          %vm1321 = vcmask 58368
          %1322 = vst.msk [vmem:[%s1318 + $0x10] sm:$0x3] %vm1321, 0.0
        $region48: #{tpu_custom_call.1} parent=39 // pred_fallthru
          _
        %v1323 = vld [vmem:[#allocation2] sm:$0xff]
        %v1324 = vld [vmem:[#allocation2 + $0x8] sm:$0xff]
        %v1325 = vld [vmem:[#allocation2 + $0x10] sm:$0x3]
        %v1326 = vld [vmem:[#allocation2 + $0x18] sm:$0xff]
        %v1327 = vld [vmem:[#allocation2 + $0x20] sm:$0xff]
        %v1328 = vld [vmem:[#allocation2 + $0x28] sm:$0x3]
        %v1329 = vld [vmem:[#allocation2 + $0x30] sm:$0xff]
        %v1330 = vld [vmem:[#allocation2 + $0x38] sm:$0xff]
        %v1331 = vld [vmem:[#allocation2 + $0x40] sm:$0x3]
        %v1332 = vld [vmem:[#allocation2 + $0x48] sm:$0xff]
        %v1333 = vld [vmem:[#allocation2 + $0x50] sm:$0xff]
        %v1334 = vld [vmem:[#allocation2 + $0x58] sm:$0x3]
        %v1335 = vld [vmem:[#allocation2 + $0x60] sm:$0xff]
        %v1336 = vld [vmem:[#allocation2 + $0x68] sm:$0xff]
        %v1337 = vld [vmem:[#allocation2 + $0x70] sm:$0x3]
        %v1338 = vld [vmem:[#allocation2 + $0x78] sm:$0xff]
        %v1339 = vld [vmem:[#allocation2 + $0x80] sm:$0xff]
        %v1340 = vld [vmem:[#allocation2 + $0x88] sm:$0x3]
        %v1341 = vld [vmem:[#allocation2 + $0x90] sm:$0xff]
        %v1342 = vld [vmem:[#allocation2 + $0x98] sm:$0xff]
        %v1343 = vld [vmem:[#allocation2 + $0xa0] sm:$0x3]
        %v1344 = vld [vmem:[#allocation2 + $0xa8] sm:$0xff]
        %v1345 = vld [vmem:[#allocation2 + $0xb0] sm:$0xff]
        %v1346 = vld [vmem:[#allocation2 + $0xb8] sm:$0x3]
        %v1347 = vld [vmem:[#allocation2 + $0xc0] sm:$0xff]
        %v1348 = vld [vmem:[#allocation2 + $0xc8] sm:$0xff]
        %v1349 = vld [vmem:[#allocation2 + $0xd0] sm:$0x3]
        %v1350 = vld [vmem:[#allocation2 + $0xd8] sm:$0xff]
        %v1351 = vld [vmem:[#allocation2 + $0xe0] sm:$0xff]
        %v1352 = vld [vmem:[#allocation2 + $0xe8] sm:$0x3]
        %v1377 = vrot.slane %v1323, 1
        %v1378 = vrot.slane %v1324, 1
        %v1379 = vsel %vm318, %v1377, %v1378
        %v1380 = vrot.slane %v1325, 1
        %v1381 = vsel %vm318, %v1378, %v1380
        %v1382 = vrot.slane %v1326, 1
        %v1383 = vrot.slane %v1327, 1
        %v1384 = vsel %vm318, %v1382, %v1383
        %v1385 = vrot.slane %v1328, 1
        %v1386 = vsel %vm318, %v1383, %v1385
        %v1387 = vrot.slane %v1329, 1
        %v1388 = vrot.slane %v1330, 1
        %v1389 = vsel %vm318, %v1387, %v1388
        %v1390 = vrot.slane %v1331, 1
        %v1391 = vsel %vm318, %v1388, %v1390
        %v1392 = vrot.slane %v1332, 1
        %v1393 = vrot.slane %v1333, 1
        %v1394 = vsel %vm318, %v1392, %v1393
        %v1395 = vrot.slane %v1334, 1
        %v1396 = vsel %vm318, %v1393, %v1395
        %v1397 = vrot.slane %v1335, 1
        %v1398 = vrot.slane %v1336, 1
        %v1399 = vsel %vm318, %v1397, %v1398
        %v1400 = vrot.slane %v1337, 1
        %v1401 = vsel %vm318, %v1398, %v1400
        %v1402 = vrot.slane %v1338, 1
        %v1403 = vrot.slane %v1339, 1
        %v1404 = vsel %vm318, %v1402, %v1403
        %v1405 = vrot.slane %v1340, 1
        %v1406 = vsel %vm318, %v1403, %v1405
        %v1407 = vrot.slane %v1341, 1
        %v1408 = vrot.slane %v1342, 1
        %v1409 = vsel %vm318, %v1407, %v1408
        %v1410 = vrot.slane %v1343, 1
        %v1411 = vsel %vm318, %v1408, %v1410
        %v1412 = vrot.slane %v1344, 1
        %v1413 = vrot.slane %v1345, 1
        %v1414 = vsel %vm318, %v1412, %v1413
        %v1415 = vrot.slane %v1346, 1
        %v1416 = vsel %vm318, %v1413, %v1415
        %1417 = vrot.lane.b32.xlu0 %v1379, 8
        %v1418 = vpop.permute.xlu0 %1417
        %1419 = vrot.lane.b32.xlu0 %v1381, 8
        %v1420 = vpop.permute.xlu0 %1419
        %1421 = vrot.lane.b32.xlu0 %v1384, 8
        %v1422 = vpop.permute.xlu0 %1421
        %1423 = vrot.lane.b32.xlu0 %v1386, 8
        %v1424 = vpop.permute.xlu0 %1423
        %1425 = vrot.lane.b32.xlu0 %v1389, 8
        %v1426 = vpop.permute.xlu0 %1425
        %1427 = vrot.lane.b32.xlu0 %v1391, 8
        %v1428 = vpop.permute.xlu0 %1427
        %1429 = vrot.lane.b32.xlu0 %v1394, 8
        %v1430 = vpop.permute.xlu0 %1429
        %1431 = vrot.lane.b32.xlu0 %v1396, 8
        %v1432 = vpop.permute.xlu0 %1431
        %1433 = vrot.lane.b32.xlu0 %v1399, 8
        %v1434 = vpop.permute.xlu0 %1433
        %1435 = vrot.lane.b32.xlu0 %v1401, 8
        %v1436 = vpop.permute.xlu0 %1435
        %1437 = vrot.lane.b32.xlu0 %v1404, 8
        %v1438 = vpop.permute.xlu0 %1437
        %1439 = vrot.lane.b32.xlu0 %v1406, 8
        %v1440 = vpop.permute.xlu0 %1439
        %1441 = vrot.lane.b32.xlu0 %v1409, 8
        %v1442 = vpop.permute.xlu0 %1441
        %1443 = vrot.lane.b32.xlu0 %v1411, 8
        %v1444 = vpop.permute.xlu0 %1443
        %1445 = vrot.lane.b32.xlu0 %v1414, 8
        %v1446 = vpop.permute.xlu0 %1445
        %1447 = vrot.lane.b32.xlu0 %v1416, 8
        %v1448 = vpop.permute.xlu0 %1447
        %v1465 = vrot.slane %v1323, 2
        %v1466 = vrot.slane %v1324, 2
        %v1467 = vsel %vm429, %v1465, %v1466
        %v1468 = vrot.slane %v1325, 2
        %v1469 = vsel %vm429, %v1466, %v1468
        %v1470 = vrot.slane %v1326, 2
        %v1471 = vrot.slane %v1327, 2
        %v1472 = vsel %vm429, %v1470, %v1471
        %v1473 = vrot.slane %v1328, 2
        %v1474 = vsel %vm429, %v1471, %v1473
        %v1475 = vrot.slane %v1329, 2
        %v1476 = vrot.slane %v1330, 2
        %v1477 = vsel %vm429, %v1475, %v1476
        %v1478 = vrot.slane %v1331, 2
        %v1479 = vsel %vm429, %v1476, %v1478
        %v1480 = vrot.slane %v1332, 2
        %v1481 = vrot.slane %v1333, 2
        %v1482 = vsel %vm429, %v1480, %v1481
        %v1483 = vrot.slane %v1334, 2
        %v1484 = vsel %vm429, %v1481, %v1483
        %v1485 = vrot.slane %v1335, 2
        %v1486 = vrot.slane %v1336, 2
        %v1487 = vsel %vm429, %v1485, %v1486
        %v1488 = vrot.slane %v1337, 2
        %v1489 = vsel %vm429, %v1486, %v1488
        %v1490 = vrot.slane %v1338, 2
        %v1491 = vrot.slane %v1339, 2
        %v1492 = vsel %vm429, %v1490, %v1491
        %v1493 = vrot.slane %v1340, 2
        %v1494 = vsel %vm429, %v1491, %v1493
        %v1495 = vrot.slane %v1341, 2
        %v1496 = vrot.slane %v1342, 2
        %v1497 = vsel %vm429, %v1495, %v1496
        %v1498 = vrot.slane %v1343, 2
        %v1499 = vsel %vm429, %v1496, %v1498
        %v1500 = vrot.slane %v1344, 2
        %v1501 = vrot.slane %v1345, 2
        %v1502 = vsel %vm429, %v1500, %v1501
        %v1503 = vrot.slane %v1346, 2
        %v1504 = vsel %vm429, %v1501, %v1503
        %1505 = vrot.lane.b32.xlu0 %v1467, 16
        %v1506 = vpop.permute.xlu0 %1505
        %1507 = vrot.lane.b32.xlu0 %v1469, 16
        %v1508 = vpop.permute.xlu0 %1507
        %1509 = vrot.lane.b32.xlu0 %v1472, 16
        %v1510 = vpop.permute.xlu0 %1509
        %1511 = vrot.lane.b32.xlu0 %v1474, 16
        %v1512 = vpop.permute.xlu0 %1511
        %1513 = vrot.lane.b32.xlu0 %v1477, 16
        %v1514 = vpop.permute.xlu0 %1513
        %1515 = vrot.lane.b32.xlu0 %v1479, 16
        %v1516 = vpop.permute.xlu0 %1515
        %1517 = vrot.lane.b32.xlu0 %v1482, 16
        %v1518 = vpop.permute.xlu0 %1517
        %1519 = vrot.lane.b32.xlu0 %v1484, 16
        %v1520 = vpop.permute.xlu0 %1519
        %1521 = vrot.lane.b32.xlu0 %v1487, 16
        %v1522 = vpop.permute.xlu0 %1521
        %1523 = vrot.lane.b32.xlu0 %v1489, 16
        %v1524 = vpop.permute.xlu0 %1523
        %1525 = vrot.lane.b32.xlu0 %v1492, 16
        %v1526 = vpop.permute.xlu0 %1525
        %1527 = vrot.lane.b32.xlu0 %v1494, 16
        %v1528 = vpop.permute.xlu0 %1527
        %1529 = vrot.lane.b32.xlu0 %v1497, 16
        %v1530 = vpop.permute.xlu0 %1529
        %1531 = vrot.lane.b32.xlu0 %v1499, 16
        %v1532 = vpop.permute.xlu0 %1531
        %1533 = vrot.lane.b32.xlu0 %v1502, 16
        %v1534 = vpop.permute.xlu0 %1533
        %1535 = vrot.lane.b32.xlu0 %v1504, 16
        %v1536 = vpop.permute.xlu0 %1535
        %1555 = vrot.lane.b32.xlu0 %v1326, 24
        %v1556 = vpop.permute.xlu0 %1555
        %1557 = vrot.lane.b32.xlu0 %v1327, 24
        %v1558 = vpop.permute.xlu0 %1557
        %1559 = vrot.lane.b32.xlu0 %v1329, 24
        %v1560 = vpop.permute.xlu0 %1559
        %1561 = vrot.lane.b32.xlu0 %v1330, 24
        %v1562 = vpop.permute.xlu0 %1561
        %1563 = vrot.lane.b32.xlu0 %v1332, 24
        %v1564 = vpop.permute.xlu0 %1563
        %1565 = vrot.lane.b32.xlu0 %v1333, 24
        %v1566 = vpop.permute.xlu0 %1565
        %1567 = vrot.lane.b32.xlu0 %v1335, 24
        %v1568 = vpop.permute.xlu0 %1567
        %1569 = vrot.lane.b32.xlu0 %v1336, 24
        %v1570 = vpop.permute.xlu0 %1569
        %1571 = vrot.lane.b32.xlu0 %v1338, 24
        %v1572 = vpop.permute.xlu0 %1571
        %1573 = vrot.lane.b32.xlu0 %v1339, 24
        %v1574 = vpop.permute.xlu0 %1573
        %1575 = vrot.lane.b32.xlu0 %v1341, 24
        %v1576 = vpop.permute.xlu0 %1575
        %1577 = vrot.lane.b32.xlu0 %v1342, 24
        %v1578 = vpop.permute.xlu0 %1577
        %1579 = vrot.lane.b32.xlu0 %v1344, 24
        %v1580 = vpop.permute.xlu0 %1579
        %1581 = vrot.lane.b32.xlu0 %v1345, 24
        %v1582 = vpop.permute.xlu0 %1581
        %1583 = vrot.lane.b32.xlu0 %v1347, 24
        %v1584 = vpop.permute.xlu0 %1583
        %1585 = vrot.lane.b32.xlu0 %v1348, 24
        %v1586 = vpop.permute.xlu0 %1585
        %v1604 = vrot.slane %v1347, 1
        %v1605 = vrot.slane %v1348, 1
        %v1606 = vsel %vm318, %v1604, %v1605
        %v1607 = vrot.slane %v1349, 1
        %v1608 = vsel %vm318, %v1605, %v1607
        %1609 = vrot.lane.b32.xlu0 %v1384, 32
        %v1610 = vpop.permute.xlu0 %1609
        %1611 = vrot.lane.b32.xlu0 %v1386, 32
        %v1612 = vpop.permute.xlu0 %1611
        %1613 = vrot.lane.b32.xlu0 %v1389, 32
        %v1614 = vpop.permute.xlu0 %1613
        %1615 = vrot.lane.b32.xlu0 %v1391, 32
        %v1616 = vpop.permute.xlu0 %1615
        %1617 = vrot.lane.b32.xlu0 %v1394, 32
        %v1618 = vpop.permute.xlu0 %1617
        %1619 = vrot.lane.b32.xlu0 %v1396, 32
        %v1620 = vpop.permute.xlu0 %1619
        %1621 = vrot.lane.b32.xlu0 %v1399, 32
        %v1622 = vpop.permute.xlu0 %1621
        %1623 = vrot.lane.b32.xlu0 %v1401, 32
        %v1624 = vpop.permute.xlu0 %1623
        %1625 = vrot.lane.b32.xlu0 %v1404, 32
        %v1626 = vpop.permute.xlu0 %1625
        %1627 = vrot.lane.b32.xlu0 %v1406, 32
        %v1628 = vpop.permute.xlu0 %1627
        %1629 = vrot.lane.b32.xlu0 %v1409, 32
        %v1630 = vpop.permute.xlu0 %1629
        %1631 = vrot.lane.b32.xlu0 %v1411, 32
        %v1632 = vpop.permute.xlu0 %1631
        %1633 = vrot.lane.b32.xlu0 %v1414, 32
        %v1634 = vpop.permute.xlu0 %1633
        %1635 = vrot.lane.b32.xlu0 %v1416, 32
        %v1636 = vpop.permute.xlu0 %1635
        %1637 = vrot.lane.b32.xlu0 %v1606, 32
        %v1638 = vpop.permute.xlu0 %1637
        %1639 = vrot.lane.b32.xlu0 %v1608, 32
        %v1640 = vpop.permute.xlu0 %1639
        %v1657 = vrot.slane %v1347, 2
        %v1658 = vrot.slane %v1348, 2
        %v1659 = vsel %vm429, %v1657, %v1658
        %v1660 = vrot.slane %v1349, 2
        %v1661 = vsel %vm429, %v1658, %v1660
        %1662 = vrot.lane.b32.xlu0 %v1472, 40
        %v1663 = vpop.permute.xlu0 %1662
        %1664 = vrot.lane.b32.xlu0 %v1474, 40
        %v1665 = vpop.permute.xlu0 %1664
        %1666 = vrot.lane.b32.xlu0 %v1477, 40
        %v1667 = vpop.permute.xlu0 %1666
        %1668 = vrot.lane.b32.xlu0 %v1479, 40
        %v1669 = vpop.permute.xlu0 %1668
        %1670 = vrot.lane.b32.xlu0 %v1482, 40
        %v1671 = vpop.permute.xlu0 %1670
        %1672 = vrot.lane.b32.xlu0 %v1484, 40
        %v1673 = vpop.permute.xlu0 %1672
        %1674 = vrot.lane.b32.xlu0 %v1487, 40
        %v1675 = vpop.permute.xlu0 %1674
        %1676 = vrot.lane.b32.xlu0 %v1489, 40
        %v1677 = vpop.permute.xlu0 %1676
        %1678 = vrot.lane.b32.xlu0 %v1492, 40
        %v1679 = vpop.permute.xlu0 %1678
        %1680 = vrot.lane.b32.xlu0 %v1494, 40
        %v1681 = vpop.permute.xlu0 %1680
        %1682 = vrot.lane.b32.xlu0 %v1497, 40
        %v1683 = vpop.permute.xlu0 %1682
        %1684 = vrot.lane.b32.xlu0 %v1499, 40
        %v1685 = vpop.permute.xlu0 %1684
        %1686 = vrot.lane.b32.xlu0 %v1502, 40
        %v1687 = vpop.permute.xlu0 %1686
        %1688 = vrot.lane.b32.xlu0 %v1504, 40
        %v1689 = vpop.permute.xlu0 %1688
        %1690 = vrot.lane.b32.xlu0 %v1659, 40
        %v1691 = vpop.permute.xlu0 %1690
        %1692 = vrot.lane.b32.xlu0 %v1661, 40
        %v1693 = vpop.permute.xlu0 %1692
        %1712 = vrot.lane.b32.xlu0 %v1329, 48
        %v1713 = vpop.permute.xlu0 %1712
        %1714 = vrot.lane.b32.xlu0 %v1330, 48
        %v1715 = vpop.permute.xlu0 %1714
        %1716 = vrot.lane.b32.xlu0 %v1332, 48
        %v1717 = vpop.permute.xlu0 %1716
        %1718 = vrot.lane.b32.xlu0 %v1333, 48
        %v1719 = vpop.permute.xlu0 %1718
        %1720 = vrot.lane.b32.xlu0 %v1335, 48
        %v1721 = vpop.permute.xlu0 %1720
        %1722 = vrot.lane.b32.xlu0 %v1336, 48
        %v1723 = vpop.permute.xlu0 %1722
        %1724 = vrot.lane.b32.xlu0 %v1338, 48
        %v1725 = vpop.permute.xlu0 %1724
        %1726 = vrot.lane.b32.xlu0 %v1339, 48
        %v1727 = vpop.permute.xlu0 %1726
        %1728 = vrot.lane.b32.xlu0 %v1341, 48
        %v1729 = vpop.permute.xlu0 %1728
        %1730 = vrot.lane.b32.xlu0 %v1342, 48
        %v1731 = vpop.permute.xlu0 %1730
        %1732 = vrot.lane.b32.xlu0 %v1344, 48
        %v1733 = vpop.permute.xlu0 %1732
        %1734 = vrot.lane.b32.xlu0 %v1345, 48
        %v1735 = vpop.permute.xlu0 %1734
        %1736 = vrot.lane.b32.xlu0 %v1347, 48
        %v1737 = vpop.permute.xlu0 %1736
        %1738 = vrot.lane.b32.xlu0 %v1348, 48
        %v1739 = vpop.permute.xlu0 %1738
        %1740 = vrot.lane.b32.xlu0 %v1350, 48
        %v1741 = vpop.permute.xlu0 %1740
        %1742 = vrot.lane.b32.xlu0 %v1351, 48
        %v1743 = vpop.permute.xlu0 %1742
        %v1761 = vrot.slane %v1350, 1
        %v1762 = vrot.slane %v1351, 1
        %v1763 = vsel %vm318, %v1761, %v1762
        %v1764 = vrot.slane %v1352, 1
        %v1765 = vsel %vm318, %v1762, %v1764
        %1766 = vrot.lane.b32.xlu0 %v1389, 56
        %v1767 = vpop.permute.xlu0 %1766
        %1768 = vrot.lane.b32.xlu0 %v1391, 56
        %v1769 = vpop.permute.xlu0 %1768
        %1770 = vrot.lane.b32.xlu0 %v1394, 56
        %v1771 = vpop.permute.xlu0 %1770
        %1772 = vrot.lane.b32.xlu0 %v1396, 56
        %v1773 = vpop.permute.xlu0 %1772
        %1774 = vrot.lane.b32.xlu0 %v1399, 56
        %v1775 = vpop.permute.xlu0 %1774
        %1776 = vrot.lane.b32.xlu0 %v1401, 56
        %v1777 = vpop.permute.xlu0 %1776
        %1778 = vrot.lane.b32.xlu0 %v1404, 56
        %v1779 = vpop.permute.xlu0 %1778
        %1780 = vrot.lane.b32.xlu0 %v1406, 56
        %v1781 = vpop.permute.xlu0 %1780
        %1782 = vrot.lane.b32.xlu0 %v1409, 56
        %v1783 = vpop.permute.xlu0 %1782
        %1784 = vrot.lane.b32.xlu0 %v1411, 56
        %v1785 = vpop.permute.xlu0 %1784
        %1786 = vrot.lane.b32.xlu0 %v1414, 56
        %v1787 = vpop.permute.xlu0 %1786
        %1788 = vrot.lane.b32.xlu0 %v1416, 56
        %v1789 = vpop.permute.xlu0 %1788
        %1790 = vrot.lane.b32.xlu0 %v1606, 56
        %v1791 = vpop.permute.xlu0 %1790
        %1792 = vrot.lane.b32.xlu0 %v1608, 56
        %v1793 = vpop.permute.xlu0 %1792
        %1794 = vrot.lane.b32.xlu0 %v1763, 56
        %v1795 = vpop.permute.xlu0 %1794
        %1796 = vrot.lane.b32.xlu0 %v1765, 56
        %v1797 = vpop.permute.xlu0 %1796
        %v1814 = vrot.slane %v1350, 2
        %v1815 = vrot.slane %v1351, 2
        %v1816 = vsel %vm429, %v1814, %v1815
        %v1817 = vrot.slane %v1352, 2
        %v1818 = vsel %vm429, %v1815, %v1817
        %1819 = vrot.lane.b32.xlu0 %v1477, 64
        %v1820 = vpop.permute.xlu0 %1819
        %1821 = vrot.lane.b32.xlu0 %v1479, 64
        %v1822 = vpop.permute.xlu0 %1821
        %1823 = vrot.lane.b32.xlu0 %v1482, 64
        %v1824 = vpop.permute.xlu0 %1823
        %1825 = vrot.lane.b32.xlu0 %v1484, 64
        %v1826 = vpop.permute.xlu0 %1825
        %1827 = vrot.lane.b32.xlu0 %v1487, 64
        %v1828 = vpop.permute.xlu0 %1827
        %1829 = vrot.lane.b32.xlu0 %v1489, 64
        %v1830 = vpop.permute.xlu0 %1829
        %1831 = vrot.lane.b32.xlu0 %v1492, 64
        %v1832 = vpop.permute.xlu0 %1831
        %1833 = vrot.lane.b32.xlu0 %v1494, 64
        %v1834 = vpop.permute.xlu0 %1833
        %1835 = vrot.lane.b32.xlu0 %v1497, 64
        %v1836 = vpop.permute.xlu0 %1835
        %1837 = vrot.lane.b32.xlu0 %v1499, 64
        %v1838 = vpop.permute.xlu0 %1837
        %1839 = vrot.lane.b32.xlu0 %v1502, 64
        %v1840 = vpop.permute.xlu0 %1839
        %1841 = vrot.lane.b32.xlu0 %v1504, 64
        %v1842 = vpop.permute.xlu0 %1841
        %1843 = vrot.lane.b32.xlu0 %v1659, 64
        %v1844 = vpop.permute.xlu0 %1843
        %1845 = vrot.lane.b32.xlu0 %v1661, 64
        %v1846 = vpop.permute.xlu0 %1845
        %1847 = vrot.lane.b32.xlu0 %v1816, 64
        %v1848 = vpop.permute.xlu0 %1847
        %1849 = vrot.lane.b32.xlu0 %v1818, 64
        %v1850 = vpop.permute.xlu0 %1849
        %v1867 = vsel %vm947, %v1323, %v1418
        %v1868 = vsel %vm947, %v1324, %v1420
        %v1869 = vsel %vm947, %v1326, %v1422
        %v1870 = vsel %vm947, %v1327, %v1424
        %v1871 = vsel %vm947, %v1329, %v1426
        %v1872 = vsel %vm947, %v1330, %v1428
        %v1873 = vsel %vm947, %v1332, %v1430
        %v1874 = vsel %vm947, %v1333, %v1432
        %v1875 = vsel %vm947, %v1335, %v1434
        %v1876 = vsel %vm947, %v1336, %v1436
        %v1877 = vsel %vm947, %v1338, %v1438
        %v1878 = vsel %vm947, %v1339, %v1440
        %v1879 = vsel %vm947, %v1341, %v1442
        %v1880 = vsel %vm947, %v1342, %v1444
        %v1881 = vsel %vm947, %v1344, %v1446
        %v1882 = vsel %vm947, %v1345, %v1448
        %v1883 = vsel %vm989, %v1867, %v1506
        %v1884 = vsel %vm989, %v1868, %v1508
        %v1885 = vsel %vm989, %v1869, %v1510
        %v1886 = vsel %vm989, %v1870, %v1512
        %v1887 = vsel %vm989, %v1871, %v1514
        %v1888 = vsel %vm989, %v1872, %v1516
        %v1889 = vsel %vm989, %v1873, %v1518
        %v1890 = vsel %vm989, %v1874, %v1520
        %v1891 = vsel %vm989, %v1875, %v1522
        %v1892 = vsel %vm989, %v1876, %v1524
        %v1893 = vsel %vm989, %v1877, %v1526
        %v1894 = vsel %vm989, %v1878, %v1528
        %v1895 = vsel %vm989, %v1879, %v1530
        %v1896 = vsel %vm989, %v1880, %v1532
        %v1897 = vsel %vm989, %v1881, %v1534
        %v1898 = vsel %vm989, %v1882, %v1536
        %v1899 = vsel %vm1031, %v1883, %v1556
        %v1900 = vsel %vm1031, %v1884, %v1558
        %v1901 = vsel %vm1031, %v1885, %v1560
        %v1902 = vsel %vm1031, %v1886, %v1562
        %v1903 = vsel %vm1031, %v1887, %v1564
        %v1904 = vsel %vm1031, %v1888, %v1566
        %v1905 = vsel %vm1031, %v1889, %v1568
        %v1906 = vsel %vm1031, %v1890, %v1570
        %v1907 = vsel %vm1031, %v1891, %v1572
        %v1908 = vsel %vm1031, %v1892, %v1574
        %v1909 = vsel %vm1031, %v1893, %v1576
        %v1910 = vsel %vm1031, %v1894, %v1578
        %v1911 = vsel %vm1031, %v1895, %v1580
        %v1912 = vsel %vm1031, %v1896, %v1582
        %v1913 = vsel %vm1031, %v1897, %v1584
        %v1914 = vsel %vm1031, %v1898, %v1586
        %v1915 = vsel %vm1073, %v1899, %v1610
        %v1916 = vsel %vm1073, %v1900, %v1612
        %v1917 = vsel %vm1073, %v1901, %v1614
        %v1918 = vsel %vm1073, %v1902, %v1616
        %v1919 = vsel %vm1073, %v1903, %v1618
        %v1920 = vsel %vm1073, %v1904, %v1620
        %v1921 = vsel %vm1073, %v1905, %v1622
        %v1922 = vsel %vm1073, %v1906, %v1624
        %v1923 = vsel %vm1073, %v1907, %v1626
        %v1924 = vsel %vm1073, %v1908, %v1628
        %v1925 = vsel %vm1073, %v1909, %v1630
        %v1926 = vsel %vm1073, %v1910, %v1632
        %v1927 = vsel %vm1073, %v1911, %v1634
        %v1928 = vsel %vm1073, %v1912, %v1636
        %v1929 = vsel %vm1073, %v1913, %v1638
        %v1930 = vsel %vm1073, %v1914, %v1640
        %vm1931 = vcmask 326656
        %v1932 = vsel %vm1931, %v1915, %v1663
        %v1933 = vsel %vm1931, %v1916, %v1665
        %v1934 = vsel %vm1931, %v1917, %v1667
        %v1935 = vsel %vm1931, %v1918, %v1669
        %v1936 = vsel %vm1931, %v1919, %v1671
        %v1937 = vsel %vm1931, %v1920, %v1673
        %v1938 = vsel %vm1931, %v1921, %v1675
        %v1939 = vsel %vm1931, %v1922, %v1677
        %v1940 = vsel %vm1931, %v1923, %v1679
        %v1941 = vsel %vm1931, %v1924, %v1681
        %v1942 = vsel %vm1931, %v1925, %v1683
        %v1943 = vsel %vm1931, %v1926, %v1685
        %v1944 = vsel %vm1931, %v1927, %v1687
        %v1945 = vsel %vm1931, %v1928, %v1689
        %v1946 = vsel %vm1931, %v1929, %v1691
        %v1947 = vsel %vm1931, %v1930, %v1693
        %vm1948 = vcmask 392192
        %v1949 = vsel %vm1948, %v1932, %v1713
        %v1950 = vsel %vm1948, %v1933, %v1715
        %v1951 = vsel %vm1948, %v1934, %v1717
        %v1952 = vsel %vm1948, %v1935, %v1719
        %v1953 = vsel %vm1948, %v1936, %v1721
        %v1954 = vsel %vm1948, %v1937, %v1723
        %v1955 = vsel %vm1948, %v1938, %v1725
        %v1956 = vsel %vm1948, %v1939, %v1727
        %v1957 = vsel %vm1948, %v1940, %v1729
        %v1958 = vsel %vm1948, %v1941, %v1731
        %v1959 = vsel %vm1948, %v1942, %v1733
        %v1960 = vsel %vm1948, %v1943, %v1735
        %v1961 = vsel %vm1948, %v1944, %v1737
        %v1962 = vsel %vm1948, %v1945, %v1739
        %v1963 = vsel %vm1948, %v1946, %v1741
        %v1964 = vsel %vm1948, %v1947, %v1743
        %vm1965 = vcmask 457728
        %v1966 = vsel %vm1965, %v1949, %v1767
        %v1967 = vsel %vm1965, %v1950, %v1769
        %v1968 = vsel %vm1965, %v1951, %v1771
        %v1969 = vsel %vm1965, %v1952, %v1773
        %v1970 = vsel %vm1965, %v1953, %v1775
        %v1971 = vsel %vm1965, %v1954, %v1777
        %v1972 = vsel %vm1965, %v1955, %v1779
        %v1973 = vsel %vm1965, %v1956, %v1781
        %v1974 = vsel %vm1965, %v1957, %v1783
        %v1975 = vsel %vm1965, %v1958, %v1785
        %v1976 = vsel %vm1965, %v1959, %v1787
        %v1977 = vsel %vm1965, %v1960, %v1789
        %v1978 = vsel %vm1965, %v1961, %v1791
        %v1979 = vsel %vm1965, %v1962, %v1793
        %v1980 = vsel %vm1965, %v1963, %v1795
        %v1981 = vsel %vm1965, %v1964, %v1797
        %vm1982 = vcmask 523264
        %v1983 = vsel %vm1982, %v1966, %v1820
        %v1984 = vsel %vm1982, %v1967, %v1822
        %v1985 = vsel %vm1982, %v1968, %v1824
        %v1986 = vsel %vm1982, %v1969, %v1826
        %v1987 = vsel %vm1982, %v1970, %v1828
        %v1988 = vsel %vm1982, %v1971, %v1830
        %v1989 = vsel %vm1982, %v1972, %v1832
        %v1990 = vsel %vm1982, %v1973, %v1834
        %v1991 = vsel %vm1982, %v1974, %v1836
        %v1992 = vsel %vm1982, %v1975, %v1838
        %v1993 = vsel %vm1982, %v1976, %v1840
        %v1994 = vsel %vm1982, %v1977, %v1842
        %v1995 = vsel %vm1982, %v1978, %v1844
        %v1996 = vsel %vm1982, %v1979, %v1846
        %v1997 = vsel %vm1982, %v1980, %v1848
        %v1998 = vsel %vm1982, %v1981, %v1850
        %v1999 = vld [vmem:[%s3] sm:$0xff]
        %v2000 = vld [vmem:[%s3 + $0x8] sm:$0xff]
        %v2001 = vld [vmem:[%s3 + $0x10] sm:$0xff]
        %v2002 = vld [vmem:[%s3 + $0x18] sm:$0xff]
        %v2003 = vld [vmem:[%s3 + $0x20] sm:$0xff]
        %v2004 = vld [vmem:[%s3 + $0x28] sm:$0xff]
        %v2005 = vld [vmem:[%s3 + $0x30] sm:$0xff]
        %v2006 = vld [vmem:[%s3 + $0x38] sm:$0xff]
        %v2007 = vld [vmem:[%s3 + $0x40] sm:$0xff]
        %v2008 = vld [vmem:[%s4] sm:$0x1]
        %v2010 = vperm.slane %v2008, 0
        %vm2012 = vcmask 588800
        %v2014 = vsel %vm2012, %v1983, 0
        %v2017 = vsel %vm2012, %v1984, 0
        %v2020 = vsel %vm2012, %v1985, 0
        %v2023 = vsel %vm2012, %v1986, 0
        %v2026 = vsel %vm2012, %v1987, 0
        %v2029 = vsel %vm2012, %v1988, 0
        %v2032 = vsel %vm2012, %v1989, 0
        %v2035 = vsel %vm2012, %v1990, 0
        %v2038 = vsel %vm2012, %v1991, 0
        %v2041 = vsel %vm2012, %v1992, 0
        %v2044 = vsel %vm2012, %v1993, 0
        %v2047 = vsel %vm2012, %v1994, 0
        %v2050 = vsel %vm2012, %v1995, 0
        %v2053 = vsel %vm2012, %v1996, 0
        %v2056 = vsel %vm2012, %v1997, 0
        %v2059 = vsel %vm2012, %v1998, 0
        %2061 = vmatpush.msra.mxu0 0.0
        %2062 = vmatpush.msra.mxu0 0.0
        %2063 = vmatpush.msra.mxu0 0.0
        %2064 = vmatpush.msra.mxu0 0.0
        %2065 = vmatpush.msra.mxu0 0.0
        %2066 = vmatpush.msra.mxu0 0.0
        %2067 = vmatpush.msra.mxu0 0.0
        %2068 = vmatpush.msra.mxu0 %v2007
        %2069 = vmatpush.msra.mxu0 %v2006
        %2070 = vmatpush.msra.mxu0 %v2005
        %2071 = vmatpush.msra.mxu0 %v2004
        %2072 = vmatpush.msra.mxu0 %v2003
        %2073 = vmatpush.msra.mxu0 %v2002
        %2074 = vmatpush.msra.mxu0 %v2001
        %2075 = vmatpush.msra.mxu0 %v2000
        %2076 = vmatpush.msra.mxu0 %v1999
        %2077 = vmatmul.f32.gmra.mxu0 %v2014
        %v2078 = vpop.f32.mrf.mxu0
        %v2079 = vadd.f32 %v2010, %v2078
        %2080 = vmatmul.f32.gmra.mxu0 %v2017
        %v2081 = vpop.f32.mrf.mxu0
        %v2082 = vadd.f32 %v2010, %v2081
        %2083 = vmatmul.f32.gmra.mxu0 %v2020
        %v2084 = vpop.f32.mrf.mxu0
        %v2085 = vadd.f32 %v2010, %v2084
        %2086 = vmatmul.f32.gmra.mxu0 %v2023
        %v2087 = vpop.f32.mrf.mxu0
        %v2088 = vadd.f32 %v2010, %v2087
        %2089 = vmatmul.f32.gmra.mxu0 %v2026
        %v2090 = vpop.f32.mrf.mxu0
        %v2091 = vadd.f32 %v2010, %v2090
        %2092 = vmatmul.f32.gmra.mxu0 %v2029
        %v2093 = vpop.f32.mrf.mxu0
        %v2094 = vadd.f32 %v2010, %v2093
        %2095 = vmatmul.f32.gmra.mxu0 %v2032
        %v2096 = vpop.f32.mrf.mxu0
        %v2097 = vadd.f32 %v2010, %v2096
        %2098 = vmatmul.f32.gmra.mxu0 %v2035
        %v2099 = vpop.f32.mrf.mxu0
        %v2100 = vadd.f32 %v2010, %v2099
        %2101 = vmatmul.f32.gmra.mxu0 %v2038
        %v2102 = vpop.f32.mrf.mxu0
        %v2103 = vadd.f32 %v2010, %v2102
        %2104 = vmatmul.f32.gmra.mxu0 %v2041
        %v2105 = vpop.f32.mrf.mxu0
        %v2106 = vadd.f32 %v2010, %v2105
        %2107 = vmatmul.f32.gmra.mxu0 %v2044
        %v2108 = vpop.f32.mrf.mxu0
        %v2109 = vadd.f32 %v2010, %v2108
        %2110 = vmatmul.f32.gmra.mxu0 %v2047
        %v2111 = vpop.f32.mrf.mxu0
        %v2112 = vadd.f32 %v2010, %v2111
        %2113 = vmatmul.f32.gmra.mxu0 %v2050
        %v2114 = vpop.f32.mrf.mxu0
        %v2115 = vadd.f32 %v2010, %v2114
        %2116 = vmatmul.f32.gmra.mxu0 %v2053
        %v2117 = vpop.f32.mrf.mxu0
        %v2118 = vadd.f32 %v2010, %v2117
        %2119 = vmatmul.f32.gmra.mxu0 %v2056
        %v2120 = vpop.f32.mrf.mxu0
        %v2121 = vadd.f32 %v2010, %v2120
        %2122 = vmatmul.f32.gmra.mxu0 %v2059
        %v2123 = vpop.f32.mrf.mxu0
        %v2124 = vadd.f32 %v2010, %v2123
        %2125 = vdwg.mxu0
        %v2126 = vmax.f32 %v2079, 0.0
        %v2127 = vmax.f32 %v2082, 0.0
        %v2128 = vmax.f32 %v2085, 0.0
        %v2129 = vmax.f32 %v2088, 0.0
        %v2130 = vmax.f32 %v2091, 0.0
        %v2131 = vmax.f32 %v2094, 0.0
        %v2132 = vmax.f32 %v2097, 0.0
        %v2133 = vmax.f32 %v2100, 0.0
        %v2134 = vmax.f32 %v2103, 0.0
        %v2135 = vmax.f32 %v2106, 0.0
        %v2136 = vmax.f32 %v2109, 0.0
        %v2137 = vmax.f32 %v2112, 0.0
        %v2138 = vmax.f32 %v2115, 0.0
        %v2139 = vmax.f32 %v2118, 0.0
        %v2140 = vmax.f32 %v2121, 0.0
        %v2141 = vmax.f32 %v2124, 0.0
        %2142 = vst [vmem:[%s241] sm:$0xff] %v2126
        %2143 = vst [vmem:[%s241 + $0x8] sm:$0xff] %v2127
        %2144 = vst [vmem:[%s241 + $0x10] sm:$0xff] %v2128
        %2145 = vst [vmem:[%s241 + $0x18] sm:$0xff] %v2129
        %2146 = vst [vmem:[%s241 + $0x20] sm:$0xff] %v2130
        %2147 = vst [vmem:[%s241 + $0x28] sm:$0xff] %v2131
        %2148 = vst [vmem:[%s241 + $0x30] sm:$0xff] %v2132
        %2149 = vst [vmem:[%s241 + $0x38] sm:$0xff] %v2133
        %2150 = vst [vmem:[%s241 + $0x40] sm:$0xff] %v2134
        %2151 = vst [vmem:[%s241 + $0x48] sm:$0xff] %v2135
        %2152 = vst [vmem:[%s241 + $0x50] sm:$0xff] %v2136
        %2153 = vst [vmem:[%s241 + $0x58] sm:$0xff] %v2137
        %2154 = vst [vmem:[%s241 + $0x60] sm:$0xff] %v2138
        %2155 = vst [vmem:[%s241 + $0x68] sm:$0xff] %v2139
        %2156 = vst [vmem:[%s241 + $0x70] sm:$0xff] %v2140
        %2157 = vst [vmem:[%s241 + $0x78] sm:$0xff] %v2141
        %s2158 = sand.u32 %s155, 1
        %s2159 = scalar_lea.sflag [#allocation4], %s2158
        %s2160 = sand.u32 %s155, 1
        %s2161 = smul.addr %s2160, 128
        %s2162 = scalar_lea.vmem [#allocation3], %s2161
        // Predicated region
        $region49: #{tpu_custom_call.1} parent=39 // pred_check
          %p2163 = pneg %p165
        $region50: #{tpu_custom_call.1} parent=39 // pred_check_branch
          %2165 = sbr.rel (%p2163) target = $region52
        $region51: #{tpu_custom_call.1} parent=39 // pred_region
          %s2166 = smul.u32 8, %s24
          %2168 = vsyncadd %s2159, 0
          %s2169 = smul.addr %s2166, 2
          %s2170 = smul.addr %s23, 32
          %s2171 = sadd.s32 %s2169, %s2170
          %s2172 = smul.addr %s2171, 8
          %s2173 = scalar_lea.hbm %s5, %s2172
          %s2174 = sshll.u32 %s2162, 4
          %s2175 = int_to_ptr.vmem [resolvable:$true] %s2174
          %s2176 = sshll.u32 %s2173, 4
          %s2177 = int_to_ptr.hbm [resolvable:$true] %s2176
          %2182 = dma.vmem_to_hbm [thread:$0]  %s2175, 2048, %s2177, %s2159, 128, 128, 8
        $region52: #{tpu_custom_call.1} parent=39 // pred_fallthru
          _
      $region40: #{tpu_custom_call.1} parent=5 // pred_fallthru
        _
      %p2183 = scmp.le.s32.totalorder 2, %s14
      // Predicated region
      $region53: #{tpu_custom_call.1} parent=5 // pred_check
        %p2184 = pneg %p2183
      $region54: #{tpu_custom_call.1} parent=5 // pred_check_branch
        %2186 = sbr.rel (%p2184) target = $region56
      $region55: #{tpu_custom_call.1} parent=5 // pred_region
        %s2187 = ssub.s32 %s14, 2
        // Predicated region
        $region57: #{tpu_custom_call.1} parent=55 // pred_check
          %p2188 = pneg %p171
        $region58: #{tpu_custom_call.1} parent=55 // pred_check_branch
          %2190 = sbr.rel (%p2188) target = $region60
        $region59: #{tpu_custom_call.1} parent=55 // pred_region
          %s2191 = sand.u32 %s156, 1
          %s2192 = scalar_lea.sflag [#allocation4], %s2191
          %s2193 = sand.u32 %s156, 1
          %s2194 = smul.addr %s2193, 128
          %s2195 = scalar_lea.vmem [#allocation3], %s2194
          %2197 = dma.done %s2192, 2048
        $region60: #{tpu_custom_call.1} parent=55 // pred_fallthru
          _
      $region56: #{tpu_custom_call.1} parent=5 // pred_fallthru
        _
    $region6: #{tpu_custom_call.1} parent=1 // loop_footer
      %s18 = sadd.s32 1, %s14
    $region7: #{tpu_custom_call.1} parent=1 // loop_footer_branch
      %13 = sbr.rel target = $region3
    $region8: #{tpu_custom_call.1} parent=1 // loop_exit
      _
    %2198 = vsyncpa [#allocation4], 1
    %s2199 = scalar_lea.sflag [#allocation4], 1
    %2200 = vsyncpa %s2199, 1

</llo_original>
